<compile_context>
chip_gen: v7x
topology: tpu7x:2x2x1
jax: 0.10.0
libtpu: 0.0.40
codegen_flags: <defaults>
</compile_context>

<pallas_src>
import jax
import jax.numpy as jnp
from jax.experimental import pallas as pl
from jax.experimental.pallas import tpu as pltpu

EPS = 1e-5
_GATHER_WINDOW = 8        # embedding-gather rows kept in flight (DMA pipeline depth)


def _round_up(x, m):
    return (x + m - 1) // m * m


# ---------------------------------------------------------------------------
# Kernel
# ---------------------------------------------------------------------------
def _mlp_kernel(u_idx_ref, p1_idx_ref, p2_idx_ref,        # scalar prefetch (SMEM)
                emb_u_hbm, emb_p1_hbm, emb_p2_hbm,        # embedding tables (HBM / ANY)
                w1_ref, b1_ref, w2_ref, b2_ref, wo_ref, bo_ref,
                o_ref,                                    # (TB, TN) output tile
                x_buf, h2_buf, sem):                      # VMEM scratch + DMA sems
    i = pl.program_id(0)          # batch tile index
    j = pl.program_id(1)          # product (output-column) tile index

    TB = x_buf.shape[0]
    F = emb_u_hbm.shape[1]        # lane-aligned (padded) n_factors slot width
    W = min(_GATHER_WINDOW, TB)   # gather pipeline depth (static)

    # ---- per-batch-tile work: fused embedding gather + hidden layers 1,2 ----
    @pl.when(j == 0)
    def _():
        def _start(r):
            b = i * TB + r
            s = r % W
            pltpu.make_async_copy(emb_u_hbm.at[u_idx_ref[b]],
                                  x_buf.at[r, pl.ds(0, F)], sem.at[s, 0]).start()
            pltpu.make_async_copy(emb_p1_hbm.at[p1_idx_ref[b]],
                                  x_buf.at[r, pl.ds(F, F)], sem.at[s, 1]).start()
            pltpu.make_async_copy(emb_p2_hbm.at[p2_idx_ref[b]],
                                  x_buf.at[r, pl.ds(2 * F, F)], sem.at[s, 2]).start()

        def _wait(r):
            s = r % W
            pltpu.make_async_copy(emb_u_hbm.at[0],
                                  x_buf.at[r, pl.ds(0, F)], sem.at[s, 0]).wait()
            pltpu.make_async_copy(emb_p1_hbm.at[0],
                                  x_buf.at[r, pl.ds(F, F)], sem.at[s, 1]).wait()
            pltpu.make_async_copy(emb_p2_hbm.at[0],
                                  x_buf.at[r, pl.ds(2 * F, F)], sem.at[s, 2]).wait()

        # Prime the window, then wait / refill row by row (manual DMA pipeline).
        def _prime(r, c):
            _start(r)
            return c

        jax.lax.fori_loop(0, W, _prime, 0)

        def _step(r, c):
            _wait(r)

            @pl.when(r + W < TB)
            def _():
                _start(r + W)

            return c

        jax.lax.fori_loop(0, TB, _step, 0)

        x = x_buf[...]
        # Hidden layer 1: (BN folded into w1/b1) Linear -> ReLU.  bf16 matmul,
        # f32 accumulation; ReLU / bias in f32.
        h1 = jnp.dot(x.astype(w1_ref.dtype), w1_ref[...],
                     preferred_element_type=jnp.float32) + b1_ref[...]
        h1 = jnp.maximum(h1, 0.0)
        # Hidden layer 2.
        h2 = jnp.dot(h1.astype(w2_ref.dtype), w2_ref[...],
                     preferred_element_type=jnp.float32) + b2_ref[...]
        h2_buf[...] = jnp.maximum(h2, 0.0)

    # ---- per-(batch, product)-tile output projection -------------------------
    o_ref[...] = (jnp.dot(h2_buf[...].astype(wo_ref.dtype), wo_ref[...],
                          preferred_element_type=jnp.float32)
                  + bo_ref[...]).astype(o_ref.dtype)


# ---------------------------------------------------------------------------
# Wrapper
# ---------------------------------------------------------------------------
def neural_net_forward(params, u_idx, p1_idx, p2_idx, *, batch_tile=128):
    """Fused eval-mode forward: embedding gather + MLP + output projection.

    Returns (B, n_products) float32 logits.
    """
    B = int(u_idx.shape[0])
    n_products = params["n_products"]
    TN = params["prod_tile"]

    emb_u, emb_p1, emb_p2 = params["emb_u"], params["emb_p1"], params["emb_p2"]
    w1, b1 = params["w1"], params["b1"]
    w2, b2 = params["w2"], params["b2"]
    wo, bo = params["wo"], params["bo"]

    F3p, H1p = w1.shape
    H2p, Np_pad = wo.shape

    # Batch tiling.  For production keep batch_tile at 128/256 and batch enough
    # requests per call that B >= batch_tile; tiny B is clamped (multiple of 8)
    # so the demo does not gather hundreds of padded rows for nothing.
    TB = min(batch_tile, _round_up(B, 8))
    B_pad = _round_up(B, TB)
    pad_b = B_pad - B

    def _pad_idx(ix):
        return jnp.pad(ix.astype(jnp.int32), (0, pad_b))

    grid = (B_pad // TB, Np_pad // TN)
    W = min(_GATHER_WINDOW, TB)

    kernel = pl.pallas_call(
        _mlp_kernel,
        out_shape=jax.ShapeDtypeStruct((B_pad, Np_pad), jnp.float32),
        grid_spec=pltpu.PrefetchScalarGridSpec(
            num_scalar_prefetch=3,                                    # u/p1/p2 indices
            grid=grid,
            in_specs=[
                pl.BlockSpec(memory_space=pl.ANY),                    # emb_u   (HBM)
                pl.BlockSpec(memory_space=pl.ANY),                    # emb_p1  (HBM)
                pl.BlockSpec(memory_space=pl.ANY),                    # emb_p2  (HBM)
                pl.BlockSpec((F3p, H1p), lambda i, j, *_: (0, 0)),    # w1 (resident)
                pl.BlockSpec((1, H1p), lambda i, j, *_: (0, 0)),      # b1
                pl.BlockSpec((H1p, H2p), lambda i, j, *_: (0, 0)),    # w2 (resident)
                pl.BlockSpec((1, H2p), lambda i, j, *_: (0, 0)),      # b2
                pl.BlockSpec((H2p, TN), lambda i, j, *_: (0, j)),     # wo tile (streamed)
                pl.BlockSpec((1, TN), lambda i, j, *_: (0, j)),       # bo tile
            ],
            out_specs=pl.BlockSpec((TB, TN), lambda i, j, *_: (i, j)),
            scratch_shapes=[
                pltpu.VMEM((TB, F3p), emb_u.dtype),    # gathered [u|p1|p2] x tile
                pltpu.VMEM((TB, H2p), jnp.float32),    # cached h2, reused across j
                pltpu.SemaphoreType.DMA((W, 3)),       # gather DMA window
            ],
        ),
        compiler_params=pltpu.CompilerParams(
            # Batch tiles are independent -> megacore-parallel on v7x.
            # Product axis reuses the h2 scratch -> keep it sequential.
            dimension_semantics=("parallel", "arbitrary"),
            # Leave headroom against v7x's 64 MiB physical VMEM.
            vmem_limit_bytes=48 * 1024 * 1024,
        ),
    )

    out = kernel(_pad_idx(u_idx), _pad_idx(p1_idx), _pad_idx(p2_idx),
                 emb_u, emb_p1, emb_p2, w1, b1, w2, b2, wo, bo)
    return out[:B, :n_products]


# ---------------------------------------------------------------------------
# Parameter prep: fold BN, pad to lane-dense shapes, cast weights to bf16
# ---------------------------------------------------------------------------
def prepare_params(raw, *, weight_dtype=jnp.bfloat16, prod_tile=512):
    n_factors = raw["emb_u"].shape[1]
    h1 = raw["w1"].shape[1]
    h2 = raw["w2"].shape[1]
    n_products = raw["wo"].shape[1]

    # ---- fold eval-mode BatchNorm1d into the preceding Linear ----
    s1 = raw["g1"] * jax.lax.rsqrt(raw["v1"] + EPS)            # (1, h1)
    w1 = raw["w1"] * s1
    b1 = (raw["b1"] - raw["m1"]) * s1 + raw["be1"]
    s2 = raw["g2"] * jax.lax.rsqrt(raw["v2"] + EPS)            # (1, h2)
    w2 = raw["w2"] * s2
    b2 = (raw["b2"] - raw["m2"]) * s2 + raw["be2"]

    # ---- lane-dense padding (multiples of 128) ----
    Fp = _round_up(n_factors, 128)          # per-embedding slot width in x
    H1p = _round_up(h1, 128)
    H2p = _round_up(h2, 128)
    prod_tile = _round_up(prod_tile, 128)
    TN = min(prod_tile, _round_up(n_products, 128))
    Np_pad = _round_up(n_products, TN)

    # Embedding tables padded to Fp columns so each gather DMA writes a full,
    # 128-lane-aligned slot.  (For very large tables you would keep them
    # unpadded and accept sub-line DMA destinations instead.)
    def _pad_emb(t):
        return jnp.pad(t, ((0, 0), (0, Fp - n_factors)))

    # w1 rows are ordered [u | p1 | p2]; pad each n_factors chunk to Fp rows.
    w1_chunks = jnp.split(w1, 3, axis=0)
    w1p = jnp.concatenate(
        [jnp.pad(c, ((0, Fp - n_factors), (0, H1p - h1))) for c in w1_chunks],
        axis=0)                                                   # (3*Fp, H1p)
    b1p = jnp.pad(b1, ((0, 0), (0, H1p - h1)))
    w2p = jnp.pad(w2, ((0, H1p - h1), (0, H2p - h2)))
    b2p = jnp.pad(b2, ((0, 0), (0, H2p - h2)))
    wop = jnp.pad(raw["wo"], ((0, H2p - h2), (0, Np_pad - n_products)))
    bop = jnp.pad(raw["bo"], ((0, 0), (0, Np_pad - n_products)))

    return dict(
        emb_u=_pad_emb(raw["emb_u"]),
        emb_p1=_pad_emb(raw["emb_p1"]),
        emb_p2=_pad_emb(raw["emb_p2"]),
        w1=w1p.astype(weight_dtype), b1=b1p.astype(jnp.float32),
        w2=w2p.astype(weight_dtype), b2=b2p.astype(jnp.float32),
        wo=wop.astype(weight_dtype), bo=bop.astype(jnp.float32),
        n_products=int(n_products), prod_tile=int(TN),
    )


# ---------------------------------------------------------------------------
# Synthetic parameters mirroring the PyTorch module + pure-JAX reference
# ---------------------------------------------------------------------------
def init_raw_params(key, n_users, n_products, n_factors, hidden):
    assert len(hidden) == 2, "kernel specialized to two hidden layers"
    h1, h2 = hidden
    f_in = 3 * n_factors
    ks = jax.random.split(key, 14)

    def lin(k, n_in, n_out):
        kw, kb = jax.random.split(k)
        lim = 1.0 / jnp.sqrt(n_in)
        w = jax.random.uniform(kw, (n_in, n_out), jnp.float32, -lim, lim)
        b = jax.random.uniform(kb, (1, n_out), jnp.float32, -lim, lim)
        return w, b

    w1, b1 = lin(ks[0], f_in, h1)
    w2, b2 = lin(ks[1], h1, h2)
    wo, bo = lin(ks[2], h2, n_products)

    return dict(
        emb_u=jax.random.normal(ks[3], (n_users, n_factors), jnp.float32) * 0.1,
        emb_p1=jax.random.normal(ks[4], (n_products, n_factors), jnp.float32) * 0.1,
        emb_p2=jax.random.normal(ks[5], (n_products, n_factors), jnp.float32) * 0.1,
        w1=w1, b1=b1, w2=w2, b2=b2, wo=wo, bo=bo,
        g1=1.0 + 0.05 * jax.random.normal(ks[6], (1, h1), jnp.float32),
        be1=0.05 * jax.random.normal(ks[7], (1, h1), jnp.float32),
        m1=0.1 * jax.random.normal(ks[8], (1, h1), jnp.float32),
        v1=jax.random.uniform(ks[9], (1, h1), jnp.float32, 0.5, 1.5),
        g2=1.0 + 0.05 * jax.random.normal(ks[10], (1, h2), jnp.float32),
        be2=0.05 * jax.random.normal(ks[11], (1, h2), jnp.float32),
        m2=0.1 * jax.random.normal(ks[12], (1, h2), jnp.float32),
        v2=jax.random.uniform(ks[13], (1, h2), jnp.float32, 0.5, 1.5),
    )


def reference_forward(raw, u_idx, p1_idx, p2_idx):
    """Pure-JAX f32 eval-mode forward (matches the PyTorch module)."""
    u = raw["emb_u"][u_idx]
    p1 = raw["emb_p1"][p1_idx]
    p2 = raw["emb_p2"][p2_idx]
    x = jnp.concatenate([u, p1, p2], axis=1)

    def bn_relu(h, g, be, m, v):
        return jnp.maximum((h - m) * jax.lax.rsqrt(v + EPS) * g + be, 0.0)

    h1 = bn_relu(x @ raw["w1"] + raw["b1"], raw["g1"], raw["be1"], raw["m1"], raw["v1"])
    h2 = bn_relu(h1 @ raw["w2"] + raw["b2"], raw["g2"], raw["be2"], raw["m2"], raw["v2"])
    return h2 @ raw["wo"] + raw["bo"]


if __name__ == "__main__":
    # Small, TPU-friendly sizes consistent with the module's forward.
    n_users, n_products = 16, 128
    n_factors = 32
    hidden = [64, 32]
    B = 8

    key = jax.random.PRNGKey(0)
    k_param, k_u, k_p1, k_p2 = jax.random.split(key, 4)

    raw = init_raw_params(k_param, n_users, n_products, n_factors, hidden)
    params = prepare_params(raw)

    u_idx = jax.random.randint(k_u, (B,), 0, n_users, dtype=jnp.int32)
    p1_idx = jax.random.randint(k_p1, (B,), 0, n_products, dtype=jnp.int32)
    p2_idx = jax.random.randint(k_p2, (B,), 0, n_products, dtype=jnp.int32)

    logits = neural_net_forward(params, u_idx, p1_idx, p2_idx)
    jax.block_until_ready(logits)

    assert logits.shape == (B, n_products), logits.shape
    assert logits.dtype == jnp.float32

    # Validate against the unfolded, unpadded f32 reference (tolerance covers
    # the bf16 weight quantization).
    ref = reference_forward(raw, u_idx, p1_idx, p2_idx)
    max_err = float(jnp.max(jnp.abs(logits - ref)))
    assert jnp.allclose(logits, ref, rtol=5e-2, atol=5e-2), max_err

    print("KERNEL_OK")
</pallas_src>

<mosaic_0001>
module attributes {stable_mosaic.version = 11 : i64} {
  func.func @_mlp_kernel(%arg0: i32, %arg1: i32, %arg2: memref<8xi32, #tpu.memory_space<smem>>, %arg3: memref<8xi32, #tpu.memory_space<smem>>, %arg4: memref<8xi32, #tpu.memory_space<smem>>, %arg5: memref<16x128xf32, #tpu.memory_space<any>>, %arg6: memref<128x128xf32, #tpu.memory_space<any>>, %arg7: memref<128x128xf32, #tpu.memory_space<any>>, %arg8: memref<384x128xbf16, #tpu.memory_space<vmem>>, %arg9: memref<1x128xf32, #tpu.memory_space<vmem>>, %arg10: memref<128x128xbf16, #tpu.memory_space<vmem>>, %arg11: memref<1x128xf32, #tpu.memory_space<vmem>>, %arg12: memref<128x128xbf16, #tpu.memory_space<vmem>>, %arg13: memref<1x128xf32, #tpu.memory_space<vmem>>, %arg14: memref<8x128xf32, #tpu.memory_space<vmem>>, %arg15: memref<8x384xf32, #tpu.memory_space<vmem>>, %arg16: memref<8x128xf32, #tpu.memory_space<vmem>>, %arg17: memref<8x3x!tpu.dma_semaphore, #tpu.memory_space<semaphore_mem>>) attributes {dimension_semantics = [#tpu.dimension_semantics<parallel>, #tpu.dimension_semantics<arbitrary>], iteration_bounds = array<i64: 1, 1>, scalar_prefetch = 3 : i64, scratch_operands = 3 : i64, tpu.core_type = #tpu.core_type<tc>, window_params = [{}, {}, {}, {pipeline_mode = #tpu.pipeline_mode<synchronous>, transform_indices = @transform_3, window_bounds = array<i64: 384, 128>}, {pipeline_mode = #tpu.pipeline_mode<synchronous>, transform_indices = @transform_4, window_bounds = array<i64: 1, 128>}, {pipeline_mode = #tpu.pipeline_mode<synchronous>, transform_indices = @transform_5, window_bounds = array<i64: 128, 128>}, {pipeline_mode = #tpu.pipeline_mode<synchronous>, transform_indices = @transform_6, window_bounds = array<i64: 1, 128>}, {transform_indices = @transform_7, window_bounds = array<i64: 128, 128>}, {transform_indices = @transform_8, window_bounds = array<i64: 1, 128>}, {transform_indices = @transform_9, window_bounds = array<i64: 8, 128>}]} {
    %c0_i32 = arith.constant 0 : i32
    %0 = arith.cmpi eq, %arg1, %c0_i32 : i32
    %1 = arith.extui %0 : i1 to i32
    %c0_i32_0 = arith.constant 0 : i32
    %2 = arith.cmpi ne, %1, %c0_i32_0 : i32
    scf.if %2 {
      %c0_i32_8 = arith.constant 0 : i32
      %c8_i32 = arith.constant 8 : i32
      %11 = arith.addi %c0_i32_8, %c8_i32 : i32
      %c1_i32 = arith.constant 1 : i32
      scf.for %arg18 = %c0_i32_8 to %11 step %c1_i32  : i32 {
        %c8_i32_30 = arith.constant 8 : i32
        %31 = arith.muli %arg0, %c8_i32_30 : i32
        %32 = arith.addi %31, %arg18 : i32
        %c8_i32_31 = arith.constant 8 : i32
        %c0_i32_32 = arith.constant 0 : i32
        %33 = arith.cmpi eq, %c8_i32_31, %c0_i32_32 : i32
        %c1_i32_33 = arith.constant 1 : i32
        %34 = arith.select %33, %c1_i32_33, %c8_i32_31 : i32
        %35 = arith.remsi %arg18, %34 : i32
        %c0_i32_34 = arith.constant 0 : i32
        %36 = arith.cmpi ne, %35, %c0_i32_34 : i32
        %c0_i32_35 = arith.constant 0 : i32
        %37 = arith.cmpi slt, %35, %c0_i32_35 : i32
        %c0_i32_36 = arith.constant 0 : i32
        %38 = arith.cmpi slt, %34, %c0_i32_36 : i32
        %39 = arith.xori %37, %38 : i1
        %40 = arith.andi %39, %36 : i1
        %41 = arith.addi %35, %34 : i32
        %42 = arith.select %40, %41, %35 : i32
        %43 = arith.index_cast %32 : i32 to index
        %44 = memref.load %arg2[%43] : memref<8xi32, #tpu.memory_space<smem>>
        %c0_i32_37 = arith.constant 0 : i32
        %c0_i32_38 = arith.constant 0 : i32
        %45 = tpu.memref_slice %arg5[%44, %c0_i32_38] : memref<16x128xf32, #tpu.memory_space<any>> -> memref<1x128xf32, #tpu.memory_space<any>>
        %46 = tpu.memref_squeeze %45 : memref<1x128xf32, #tpu.memory_space<any>> -> memref<128xf32, #tpu.memory_space<any>>
        %c0_i32_39 = arith.constant 0 : i32
        %47 = tpu.memref_slice %arg15[%arg18, %c0_i32_39] : memref<8x384xf32, #tpu.memory_space<vmem>> -> memref<1x128xf32, #tpu.memory_space<vmem>>
        %48 = tpu.memref_squeeze %47 : memref<1x128xf32, #tpu.memory_space<vmem>> -> memref<128xf32, #tpu.memory_space<vmem>>
        %49 = tpu.memref_slice %arg17[%42, %c0_i32_37] : memref<8x3x!tpu.dma_semaphore, #tpu.memory_space<semaphore_mem>> -> memref<1x1x!tpu.dma_semaphore, #tpu.memory_space<semaphore_mem>>
        %50 = tpu.memref_squeeze %49 : memref<1x1x!tpu.dma_semaphore, #tpu.memory_space<semaphore_mem>> -> memref<!tpu.dma_semaphore, #tpu.memory_space<semaphore_mem>>
        tpu.enqueue_dma source(%46 : memref<128xf32, #tpu.memory_space<any>>) target(%48 : memref<128xf32, #tpu.memory_space<vmem>>) target_semaphore(%50 : memref<!tpu.dma_semaphore, #tpu.memory_space<semaphore_mem>>)
        %51 = arith.index_cast %32 : i32 to index
        %52 = memref.load %arg3[%51] : memref<8xi32, #tpu.memory_space<smem>>
        %c1_i32_40 = arith.constant 1 : i32
        %c0_i32_41 = arith.constant 0 : i32
        %53 = tpu.memref_slice %arg6[%52, %c0_i32_41] : memref<128x128xf32, #tpu.memory_space<any>> -> memref<1x128xf32, #tpu.memory_space<any>>
        %54 = tpu.memref_squeeze %53 : memref<1x128xf32, #tpu.memory_space<any>> -> memref<128xf32, #tpu.memory_space<any>>
        %c128_i32 = arith.constant 128 : i32
        %55 = tpu.memref_slice %arg15[%arg18, %c128_i32] : memref<8x384xf32, #tpu.memory_space<vmem>> -> memref<1x128xf32, #tpu.memory_space<vmem>>
        %56 = tpu.memref_squeeze %55 : memref<1x128xf32, #tpu.memory_space<vmem>> -> memref<128xf32, #tpu.memory_space<vmem>>
        %57 = tpu.memref_slice %arg17[%42, %c1_i32_40] : memref<8x3x!tpu.dma_semaphore, #tpu.memory_space<semaphore_mem>> -> memref<1x1x!tpu.dma_semaphore, #tpu.memory_space<semaphore_mem>>
        %58 = tpu.memref_squeeze %57 : memref<1x1x!tpu.dma_semaphore, #tpu.memory_space<semaphore_mem>> -> memref<!tpu.dma_semaphore, #tpu.memory_space<semaphore_mem>>
        tpu.enqueue_dma source(%54 : memref<128xf32, #tpu.memory_space<any>>) target(%56 : memref<128xf32, #tpu.memory_space<vmem>>) target_semaphore(%58 : memref<!tpu.dma_semaphore, #tpu.memory_space<semaphore_mem>>)
        %59 = arith.index_cast %32 : i32 to index
        %60 = memref.load %arg4[%59] : memref<8xi32, #tpu.memory_space<smem>>
        %c2_i32 = arith.constant 2 : i32
        %c0_i32_42 = arith.constant 0 : i32
        %61 = tpu.memref_slice %arg7[%60, %c0_i32_42] : memref<128x128xf32, #tpu.memory_space<any>> -> memref<1x128xf32, #tpu.memory_space<any>>
        %62 = tpu.memref_squeeze %61 : memref<1x128xf32, #tpu.memory_space<any>> -> memref<128xf32, #tpu.memory_space<any>>
        %c256_i32 = arith.constant 256 : i32
        %63 = tpu.memref_slice %arg15[%arg18, %c256_i32] : memref<8x384xf32, #tpu.memory_space<vmem>> -> memref<1x128xf32, #tpu.memory_space<vmem>>
        %64 = tpu.memref_squeeze %63 : memref<1x128xf32, #tpu.memory_space<vmem>> -> memref<128xf32, #tpu.memory_space<vmem>>
        %65 = tpu.memref_slice %arg17[%42, %c2_i32] : memref<8x3x!tpu.dma_semaphore, #tpu.memory_space<semaphore_mem>> -> memref<1x1x!tpu.dma_semaphore, #tpu.memory_space<semaphore_mem>>
        %66 = tpu.memref_squeeze %65 : memref<1x1x!tpu.dma_semaphore, #tpu.memory_space<semaphore_mem>> -> memref<!tpu.dma_semaphore, #tpu.memory_space<semaphore_mem>>
        tpu.enqueue_dma source(%62 : memref<128xf32, #tpu.memory_space<any>>) target(%64 : memref<128xf32, #tpu.memory_space<vmem>>) target_semaphore(%66 : memref<!tpu.dma_semaphore, #tpu.memory_space<semaphore_mem>>)
      }
      %c8_i32_9 = arith.constant 8 : i32
      %c0_i32_10 = arith.constant 0 : i32
      %c8_i32_11 = arith.constant 8 : i32
      %12 = arith.addi %c0_i32_10, %c8_i32_11 : i32
      %c1_i32_12 = arith.constant 1 : i32
      scf.for %arg18 = %c0_i32_10 to %12 step %c1_i32_12  : i32 {
        %c8_i32_30 = arith.constant 8 : i32
        %c0_i32_31 = arith.constant 0 : i32
        %31 = arith.cmpi eq, %c8_i32_30, %c0_i32_31 : i32
        %c1_i32_32 = arith.constant 1 : i32
        %32 = arith.select %31, %c1_i32_32, %c8_i32_30 : i32
        %33 = arith.remsi %arg18, %32 : i32
        %c0_i32_33 = arith.constant 0 : i32
        %34 = arith.cmpi ne, %33, %c0_i32_33 : i32
        %c0_i32_34 = arith.constant 0 : i32
        %35 = arith.cmpi slt, %33, %c0_i32_34 : i32
        %c0_i32_35 = arith.constant 0 : i32
        %36 = arith.cmpi slt, %32, %c0_i32_35 : i32
        %37 = arith.xori %35, %36 : i1
        %38 = arith.andi %37, %34 : i1
        %39 = arith.addi %33, %32 : i32
        %40 = arith.select %38, %39, %33 : i32
        %c0_i32_36 = arith.constant 0 : i32
        %c0_i32_37 = arith.constant 0 : i32
        %c0_i32_38 = arith.constant 0 : i32
        %41 = tpu.memref_slice %arg5[%c0_i32_36, %c0_i32_38] : memref<16x128xf32, #tpu.memory_space<any>> -> memref<1x128xf32, #tpu.memory_space<any>>
        %42 = tpu.memref_squeeze %41 : memref<1x128xf32, #tpu.memory_space<any>> -> memref<128xf32, #tpu.memory_space<any>>
        %c0_i32_39 = arith.constant 0 : i32
        %43 = tpu.memref_slice %arg15[%arg18, %c0_i32_39] : memref<8x384xf32, #tpu.memory_space<vmem>> -> memref<1x128xf32, #tpu.memory_space<vmem>>
        %44 = tpu.memref_squeeze %43 : memref<1x128xf32, #tpu.memory_space<vmem>> -> memref<128xf32, #tpu.memory_space<vmem>>
        %45 = tpu.memref_slice %arg17[%40, %c0_i32_37] : memref<8x3x!tpu.dma_semaphore, #tpu.memory_space<semaphore_mem>> -> memref<1x1x!tpu.dma_semaphore, #tpu.memory_space<semaphore_mem>>
        %46 = tpu.memref_squeeze %45 : memref<1x1x!tpu.dma_semaphore, #tpu.memory_space<semaphore_mem>> -> memref<!tpu.dma_semaphore, #tpu.memory_space<semaphore_mem>>
        tpu.wait_dma2 semaphore(%46 : memref<!tpu.dma_semaphore, #tpu.memory_space<semaphore_mem>>) src(%42 : memref<128xf32, #tpu.memory_space<any>>) dst(%44 : memref<128xf32, #tpu.memory_space<vmem>>)
        %c0_i32_40 = arith.constant 0 : i32
        %c1_i32_41 = arith.constant 1 : i32
        %c0_i32_42 = arith.constant 0 : i32
        %47 = tpu.memref_slice %arg6[%c0_i32_40, %c0_i32_42] : memref<128x128xf32, #tpu.memory_space<any>> -> memref<1x128xf32, #tpu.memory_space<any>>
        %48 = tpu.memref_squeeze %47 : memref<1x128xf32, #tpu.memory_space<any>> -> memref<128xf32, #tpu.memory_space<any>>
        %c128_i32 = arith.constant 128 : i32
        %49 = tpu.memref_slice %arg15[%arg18, %c128_i32] : memref<8x384xf32, #tpu.memory_space<vmem>> -> memref<1x128xf32, #tpu.memory_space<vmem>>
        %50 = tpu.memref_squeeze %49 : memref<1x128xf32, #tpu.memory_space<vmem>> -> memref<128xf32, #tpu.memory_space<vmem>>
        %51 = tpu.memref_slice %arg17[%40, %c1_i32_41] : memref<8x3x!tpu.dma_semaphore, #tpu.memory_space<semaphore_mem>> -> memref<1x1x!tpu.dma_semaphore, #tpu.memory_space<semaphore_mem>>
        %52 = tpu.memref_squeeze %51 : memref<1x1x!tpu.dma_semaphore, #tpu.memory_space<semaphore_mem>> -> memref<!tpu.dma_semaphore, #tpu.memory_space<semaphore_mem>>
        tpu.wait_dma2 semaphore(%52 : memref<!tpu.dma_semaphore, #tpu.memory_space<semaphore_mem>>) src(%48 : memref<128xf32, #tpu.memory_space<any>>) dst(%50 : memref<128xf32, #tpu.memory_space<vmem>>)
        %c0_i32_43 = arith.constant 0 : i32
        %c2_i32 = arith.constant 2 : i32
        %c0_i32_44 = arith.constant 0 : i32
        %53 = tpu.memref_slice %arg7[%c0_i32_43, %c0_i32_44] : memref<128x128xf32, #tpu.memory_space<any>> -> memref<1x128xf32, #tpu.memory_space<any>>
        %54 = tpu.memref_squeeze %53 : memref<1x128xf32, #tpu.memory_space<any>> -> memref<128xf32, #tpu.memory_space<any>>
        %c256_i32 = arith.constant 256 : i32
        %55 = tpu.memref_slice %arg15[%arg18, %c256_i32] : memref<8x384xf32, #tpu.memory_space<vmem>> -> memref<1x128xf32, #tpu.memory_space<vmem>>
        %56 = tpu.memref_squeeze %55 : memref<1x128xf32, #tpu.memory_space<vmem>> -> memref<128xf32, #tpu.memory_space<vmem>>
        %57 = tpu.memref_slice %arg17[%40, %c2_i32] : memref<8x3x!tpu.dma_semaphore, #tpu.memory_space<semaphore_mem>> -> memref<1x1x!tpu.dma_semaphore, #tpu.memory_space<semaphore_mem>>
        %58 = tpu.memref_squeeze %57 : memref<1x1x!tpu.dma_semaphore, #tpu.memory_space<semaphore_mem>> -> memref<!tpu.dma_semaphore, #tpu.memory_space<semaphore_mem>>
        tpu.wait_dma2 semaphore(%58 : memref<!tpu.dma_semaphore, #tpu.memory_space<semaphore_mem>>) src(%54 : memref<128xf32, #tpu.memory_space<any>>) dst(%56 : memref<128xf32, #tpu.memory_space<vmem>>)
        %c8_i32_45 = arith.constant 8 : i32
        %59 = arith.addi %arg18, %c8_i32_45 : i32
        %c8_i32_46 = arith.constant 8 : i32
        %60 = arith.cmpi slt, %59, %c8_i32_46 : i32
        %61 = arith.extui %60 : i1 to i32
        %c0_i32_47 = arith.constant 0 : i32
        %62 = arith.cmpi ne, %61, %c0_i32_47 : i32
        scf.if %62 {
          %c8_i32_48 = arith.constant 8 : i32
          %63 = arith.addi %arg18, %c8_i32_48 : i32
          %c8_i32_49 = arith.constant 8 : i32
          %64 = arith.muli %arg0, %c8_i32_49 : i32
          %65 = arith.addi %64, %63 : i32
          %c8_i32_50 = arith.constant 8 : i32
          %c0_i32_51 = arith.constant 0 : i32
          %66 = arith.cmpi eq, %c8_i32_50, %c0_i32_51 : i32
          %c1_i32_52 = arith.constant 1 : i32
          %67 = arith.select %66, %c1_i32_52, %c8_i32_50 : i32
          %68 = arith.remsi %63, %67 : i32
          %c0_i32_53 = arith.constant 0 : i32
          %69 = arith.cmpi ne, %68, %c0_i32_53 : i32
          %c0_i32_54 = arith.constant 0 : i32
          %70 = arith.cmpi slt, %68, %c0_i32_54 : i32
          %c0_i32_55 = arith.constant 0 : i32
          %71 = arith.cmpi slt, %67, %c0_i32_55 : i32
          %72 = arith.xori %70, %71 : i1
          %73 = arith.andi %72, %69 : i1
          %74 = arith.addi %68, %67 : i32
          %75 = arith.select %73, %74, %68 : i32
          %76 = arith.index_cast %65 : i32 to index
          %77 = memref.load %arg2[%76] : memref<8xi32, #tpu.memory_space<smem>>
          %c0_i32_56 = arith.constant 0 : i32
          %c0_i32_57 = arith.constant 0 : i32
          %78 = tpu.memref_slice %arg5[%77, %c0_i32_57] : memref<16x128xf32, #tpu.memory_space<any>> -> memref<1x128xf32, #tpu.memory_space<any>>
          %79 = tpu.memref_squeeze %78 : memref<1x128xf32, #tpu.memory_space<any>> -> memref<128xf32, #tpu.memory_space<any>>
          %c0_i32_58 = arith.constant 0 : i32
          %80 = tpu.memref_slice %arg15[%63, %c0_i32_58] : memref<8x384xf32, #tpu.memory_space<vmem>> -> memref<1x128xf32, #tpu.memory_space<vmem>>
          %81 = tpu.memref_squeeze %80 : memref<1x128xf32, #tpu.memory_space<vmem>> -> memref<128xf32, #tpu.memory_space<vmem>>
          %82 = tpu.memref_slice %arg17[%75, %c0_i32_56] : memref<8x3x!tpu.dma_semaphore, #tpu.memory_space<semaphore_mem>> -> memref<1x1x!tpu.dma_semaphore, #tpu.memory_space<semaphore_mem>>
          %83 = tpu.memref_squeeze %82 : memref<1x1x!tpu.dma_semaphore, #tpu.memory_space<semaphore_mem>> -> memref<!tpu.dma_semaphore, #tpu.memory_space<semaphore_mem>>
          tpu.enqueue_dma source(%79 : memref<128xf32, #tpu.memory_space<any>>) target(%81 : memref<128xf32, #tpu.memory_space<vmem>>) target_semaphore(%83 : memref<!tpu.dma_semaphore, #tpu.memory_space<semaphore_mem>>)
          %84 = arith.index_cast %65 : i32 to index
          %85 = memref.load %arg3[%84] : memref<8xi32, #tpu.memory_space<smem>>
          %c1_i32_59 = arith.constant 1 : i32
          %c0_i32_60 = arith.constant 0 : i32
          %86 = tpu.memref_slice %arg6[%85, %c0_i32_60] : memref<128x128xf32, #tpu.memory_space<any>> -> memref<1x128xf32, #tpu.memory_space<any>>
          %87 = tpu.memref_squeeze %86 : memref<1x128xf32, #tpu.memory_space<any>> -> memref<128xf32, #tpu.memory_space<any>>
          %c128_i32_61 = arith.constant 128 : i32
          %88 = tpu.memref_slice %arg15[%63, %c128_i32_61] : memref<8x384xf32, #tpu.memory_space<vmem>> -> memref<1x128xf32, #tpu.memory_space<vmem>>
          %89 = tpu.memref_squeeze %88 : memref<1x128xf32, #tpu.memory_space<vmem>> -> memref<128xf32, #tpu.memory_space<vmem>>
          %90 = tpu.memref_slice %arg17[%75, %c1_i32_59] : memref<8x3x!tpu.dma_semaphore, #tpu.memory_space<semaphore_mem>> -> memref<1x1x!tpu.dma_semaphore, #tpu.memory_space<semaphore_mem>>
          %91 = tpu.memref_squeeze %90 : memref<1x1x!tpu.dma_semaphore, #tpu.memory_space<semaphore_mem>> -> memref<!tpu.dma_semaphore, #tpu.memory_space<semaphore_mem>>
          tpu.enqueue_dma source(%87 : memref<128xf32, #tpu.memory_space<any>>) target(%89 : memref<128xf32, #tpu.memory_space<vmem>>) target_semaphore(%91 : memref<!tpu.dma_semaphore, #tpu.memory_space<semaphore_mem>>)
          %92 = arith.index_cast %65 : i32 to index
          %93 = memref.load %arg4[%92] : memref<8xi32, #tpu.memory_space<smem>>
          %c2_i32_62 = arith.constant 2 : i32
          %c0_i32_63 = arith.constant 0 : i32
          %94 = tpu.memref_slice %arg7[%93, %c0_i32_63] : memref<128x128xf32, #tpu.memory_space<any>> -> memref<1x128xf32, #tpu.memory_space<any>>
          %95 = tpu.memref_squeeze %94 : memref<1x128xf32, #tpu.memory_space<any>> -> memref<128xf32, #tpu.memory_space<any>>
          %c256_i32_64 = arith.constant 256 : i32
          %96 = tpu.memref_slice %arg15[%63, %c256_i32_64] : memref<8x384xf32, #tpu.memory_space<vmem>> -> memref<1x128xf32, #tpu.memory_space<vmem>>
          %97 = tpu.memref_squeeze %96 : memref<1x128xf32, #tpu.memory_space<vmem>> -> memref<128xf32, #tpu.memory_space<vmem>>
          %98 = tpu.memref_slice %arg17[%75, %c2_i32_62] : memref<8x3x!tpu.dma_semaphore, #tpu.memory_space<semaphore_mem>> -> memref<1x1x!tpu.dma_semaphore, #tpu.memory_space<semaphore_mem>>
          %99 = tpu.memref_squeeze %98 : memref<1x1x!tpu.dma_semaphore, #tpu.memory_space<semaphore_mem>> -> memref<!tpu.dma_semaphore, #tpu.memory_space<semaphore_mem>>
          tpu.enqueue_dma source(%95 : memref<128xf32, #tpu.memory_space<any>>) target(%97 : memref<128xf32, #tpu.memory_space<vmem>>) target_semaphore(%99 : memref<!tpu.dma_semaphore, #tpu.memory_space<semaphore_mem>>)
        } else {
        }
      }
      %c8_i32_13 = arith.constant 8 : i32
      %c0_14 = arith.constant 0 : index
      %c0_15 = arith.constant 0 : index
      %13 = vector.load %arg15[%c0_14, %c0_15] : memref<8x384xf32, #tpu.memory_space<vmem>>, vector<8x384xf32>
      %14 = arith.truncf %13 : vector<8x384xf32> to vector<8x384xbf16>
      %c0_16 = arith.constant 0 : index
      %c0_17 = arith.constant 0 : index
      %15 = vector.load %arg8[%c0_16, %c0_17] : memref<384x128xbf16, #tpu.memory_space<vmem>>, vector<384x128xbf16>
      %cst_18 = arith.constant dense<0.000000e+00> : vector<8x128xf32>
      %16 = tpu.matmul %14, %15, %cst_18 {dimension_numbers = #tpu.dot_dimension_numbers<[1], [0], [0], [1], [0, 0, 1, 1], [], []>} : vector<8x384xbf16>, vector<384x128xbf16>, vector<8x128xf32> -> vector<8x128xf32>
      %c0_19 = arith.constant 0 : index
      %c0_20 = arith.constant 0 : index
      %17 = vector.load %arg9[%c0_19, %c0_20] : memref<1x128xf32, #tpu.memory_space<vmem>>, vector<1x128xf32>
      %18 = vector.broadcast %17 : vector<1x128xf32> to vector<8x128xf32>
      %19 = arith.addf %16, %18 : vector<8x128xf32>
      %cst_21 = arith.constant 0.000000e+00 : f32
      %20 = vector.broadcast %cst_21 : f32 to vector<8x128xf32>
      %21 = arith.maximumf %19, %20 : vector<8x128xf32>
      %22 = arith.truncf %21 : vector<8x128xf32> to vector<8x128xbf16>
      %c0_22 = arith.constant 0 : index
      %c0_23 = arith.constant 0 : index
      %23 = vector.load %arg10[%c0_22, %c0_23] : memref<128x128xbf16, #tpu.memory_space<vmem>>, vector<128x128xbf16>
      %cst_24 = arith.constant dense<0.000000e+00> : vector<8x128xf32>
      %24 = tpu.matmul %22, %23, %cst_24 {dimension_numbers = #tpu.dot_dimension_numbers<[1], [0], [0], [1], [0, 0, 1, 1], [], []>} : vector<8x128xbf16>, vector<128x128xbf16>, vector<8x128xf32> -> vector<8x128xf32>
      %c0_25 = arith.constant 0 : index
      %c0_26 = arith.constant 0 : index
      %25 = vector.load %arg11[%c0_25, %c0_26] : memref<1x128xf32, #tpu.memory_space<vmem>>, vector<1x128xf32>
      %26 = vector.broadcast %25 : vector<1x128xf32> to vector<8x128xf32>
      %27 = arith.addf %24, %26 : vector<8x128xf32>
      %cst_27 = arith.constant 0.000000e+00 : f32
      %28 = vector.broadcast %cst_27 : f32 to vector<8x128xf32>
      %29 = arith.maximumf %27, %28 : vector<8x128xf32>
      %c0_28 = arith.constant 0 : index
      %c0_29 = arith.constant 0 : index
      %30 = vector.load %arg16[%c0_28, %c0_29] : memref<8x128xf32, #tpu.memory_space<vmem>>, vector<8x128xf32>
      tpu.vector_store %arg16[%c0_28, %c0_29], %29 {strides = array<i32>} : memref<8x128xf32, #tpu.memory_space<vmem>>, vector<8x128xf32>,
    } else {
    }
    %c0 = arith.constant 0 : index
    %c0_1 = arith.constant 0 : index
    %3 = vector.load %arg16[%c0, %c0_1] : memref<8x128xf32, #tpu.memory_space<vmem>>, vector<8x128xf32>
    %4 = arith.truncf %3 : vector<8x128xf32> to vector<8x128xbf16>
    %c0_2 = arith.constant 0 : index
    %c0_3 = arith.constant 0 : index
    %5 = vector.load %arg12[%c0_2, %c0_3] : memref<128x128xbf16, #tpu.memory_space<vmem>>, vector<128x128xbf16>
    %cst = arith.constant dense<0.000000e+00> : vector<8x128xf32>
    %6 = tpu.matmul %4, %5, %cst {dimension_numbers = #tpu.dot_dimension_numbers<[1], [0], [0], [1], [0, 0, 1, 1], [], []>} : vector<8x128xbf16>, vector<128x128xbf16>, vector<8x128xf32> -> vector<8x128xf32>
    %c0_4 = arith.constant 0 : index
    %c0_5 = arith.constant 0 : index
    %7 = vector.load %arg13[%c0_4, %c0_5] : memref<1x128xf32, #tpu.memory_space<vmem>>, vector<1x128xf32>
    %8 = vector.broadcast %7 : vector<1x128xf32> to vector<8x128xf32>
    %9 = arith.addf %6, %8 : vector<8x128xf32>
    %c0_6 = arith.constant 0 : index
    %c0_7 = arith.constant 0 : index
    %10 = vector.load %arg14[%c0_6, %c0_7] : memref<8x128xf32, #tpu.memory_space<vmem>>, vector<8x128xf32>
    tpu.vector_store %arg14[%c0_6, %c0_7], %9 {strides = array<i32>} : memref<8x128xf32, #tpu.memory_space<vmem>>, vector<8x128xf32>,
    return
  }
  func.func @transform_3(%arg0: i32, %arg1: i32, %arg2: memref<8xi32, #tpu.memory_space<smem>>, %arg3: memref<8xi32, #tpu.memory_space<smem>>, %arg4: memref<8xi32, #tpu.memory_space<smem>>) -> (i32, i32) {
    %c0_i32 = arith.constant 0 : i32
    %c0_i32_0 = arith.constant 0 : i32
    %c0_i32_1 = arith.constant 0 : i32
    return %c0_i32, %c0_i32_0 : i32, i32
  }
  func.func @transform_4(%arg0: i32, %arg1: i32, %arg2: memref<8xi32, #tpu.memory_space<smem>>, %arg3: memref<8xi32, #tpu.memory_space<smem>>, %arg4: memref<8xi32, #tpu.memory_space<smem>>) -> (i32, i32) {
    %c0_i32 = arith.constant 0 : i32
    %c0_i32_0 = arith.constant 0 : i32
    %c0_i32_1 = arith.constant 0 : i32
    return %c0_i32, %c0_i32_0 : i32, i32
  }
  func.func @transform_5(%arg0: i32, %arg1: i32, %arg2: memref<8xi32, #tpu.memory_space<smem>>, %arg3: memref<8xi32, #tpu.memory_space<smem>>, %arg4: memref<8xi32, #tpu.memory_space<smem>>) -> (i32, i32) {
    %c0_i32 = arith.constant 0 : i32
    %c0_i32_0 = arith.constant 0 : i32
    %c0_i32_1 = arith.constant 0 : i32
    return %c0_i32, %c0_i32_0 : i32, i32
  }
  func.func @transform_6(%arg0: i32, %arg1: i32, %arg2: memref<8xi32, #tpu.memory_space<smem>>, %arg3: memref<8xi32, #tpu.memory_space<smem>>, %arg4: memref<8xi32, #tpu.memory_space<smem>>) -> (i32, i32) {
    %c0_i32 = arith.constant 0 : i32
    %c0_i32_0 = arith.constant 0 : i32
    %c0_i32_1 = arith.constant 0 : i32
    return %c0_i32, %c0_i32_0 : i32, i32
  }
  func.func @transform_7(%arg0: i32, %arg1: i32, %arg2: memref<8xi32, #tpu.memory_space<smem>>, %arg3: memref<8xi32, #tpu.memory_space<smem>>, %arg4: memref<8xi32, #tpu.memory_space<smem>>) -> (i32, i32) {
    %c0_i32 = arith.constant 0 : i32
    %c0_i32_0 = arith.constant 0 : i32
    return %c0_i32, %arg1 : i32, i32
  }
  func.func @transform_8(%arg0: i32, %arg1: i32, %arg2: memref<8xi32, #tpu.memory_space<smem>>, %arg3: memref<8xi32, #tpu.memory_space<smem>>, %arg4: memref<8xi32, #tpu.memory_space<smem>>) -> (i32, i32) {
    %c0_i32 = arith.constant 0 : i32
    %c0_i32_0 = arith.constant 0 : i32
    return %c0_i32, %arg1 : i32, i32
  }
  func.func @transform_9(%arg0: i32, %arg1: i32, %arg2: memref<8xi32, #tpu.memory_space<smem>>, %arg3: memref<8xi32, #tpu.memory_space<smem>>, %arg4: memref<8xi32, #tpu.memory_space<smem>>) -> (i32, i32) {
    %c0_i32 = arith.constant 0 : i32
    return %arg0, %arg1 : i32, i32
  }
}

</mosaic_0001>

<llo_original>
// kernel: tpu_custom_call.1
$region0: #{tpu_custom_call.1}
  #allocation0 [shape = 'u32[]', space=smem, size = 0x4, offset = 0x4, fixed_abs, tag = 'smem constant byte address 0x4 - core index']
  #allocation1 [shape = 'u32[144,128]{1,0:T(1,128)}', space=vmem, size = 0x12000, scoped, tag = 'internal scratch']
  #allocation2 [shape = 'f32[8,384]{1,0:T(8,128)}', space=vmem, size = 0x3000, scoped, tag = 'scratch operand']
  #allocation3 [shape = 'f32[8,128]{1,0:T(8,128)}', space=vmem, size = 0x1000, scoped, tag = 'scratch operand']
  #allocation4 [shape = 's32[24]{0}', space=sflag, size = 0x60, scoped, tag = 'scratch operand']
  #allocation5 [shape = 's32[1]{0}', space=sflag, size = 0x4, scoped, tag = 'scoped memory for tpu_custom_call.1']
  #allocation6 [shape = 'u8[512]{0}', space=smem, size = 0x200, scoped, tag = 'prefetched SMEM operand 0']
  #allocation7 [shape = 'u8[512]{0}', space=smem, size = 0x200, scoped, tag = 'prefetched SMEM operand 1']
  #allocation8 [shape = 'u8[512]{0}', space=smem, size = 0x200, scoped, tag = 'prefetched SMEM operand 2']
  #allocation16 [shape = 's32[]', space=sflag, size = 0x4, offset = 0, fixed_abs, tag = 'sflag constant byte address 0x0 - dummy sync flag']
  #allocation17 [shape = 's32[]', space=sflag, size = 0x4, offset = 0, fixed_abs, tag = 'sflag constant byte address 0x0 - dummy sync flag']
  #allocation18 [shape = 'u32[]', space=smem, size = 0x4, offset = 0x44, fixed_abs, tag = 'smem constant byte address 0x44 - assertion arg 0']
  #allocation19 [shape = 'u32[]', space=smem, size = 0x4, offset = 0x48, fixed_abs, tag = 'smem constant byte address 0x48 - assertion arg 1']
  #allocation20 [shape = 's32[]', space=sflag, size = 0x4, offset = 0, fixed_abs, tag = 'sflag constant byte address 0x0 - dummy sync flag']
  #allocation21 [shape = 's32[]', space=sflag, size = 0x4, offset = 0, fixed_abs, tag = 'sflag constant byte address 0x0 - dummy sync flag']
  #allocation22 [shape = 's32[]', space=sflag, size = 0x4, offset = 0, fixed_abs, tag = 'sflag constant byte address 0x0 - dummy sync flag']
  #allocation23 [shape = 's32[]', space=sflag, size = 0x4, offset = 0, fixed_abs, tag = 'sflag constant byte address 0x0 - dummy sync flag']
  #allocation24 [shape = 's32[]', space=sflag, size = 0x4, offset = 0, fixed_abs, tag = 'sflag constant byte address 0x0 - dummy sync flag']
  #allocation25 [shape = 's32[]', space=sflag, size = 0x4, offset = 0, fixed_abs, tag = 'sflag constant byte address 0x0 - dummy sync flag']
  #allocation26 [shape = 's32[]', space=sflag, size = 0x4, offset = 0, fixed_abs, tag = 'sflag constant byte address 0x0 - dummy sync flag']
  #allocation27 [shape = 's32[]', space=sflag, size = 0x4, offset = 0, fixed_abs, tag = 'sflag constant byte address 0x0 - dummy sync flag']
  #allocation28 [shape = 's32[]', space=sflag, size = 0x4, offset = 0, fixed_abs, tag = 'sflag constant byte address 0x0 - dummy sync flag']
  #allocation29 [shape = 's32[]', space=sflag, size = 0x4, offset = 0, fixed_abs, tag = 'sflag constant byte address 0x0 - dummy sync flag']
  %s0 = inlined_call_operand.hbm [shape: s32[8], index: 0, kind: input, shape index: {}]
  %s1 = inlined_call_operand.vmem [shape: s32[8], index: 1, kind: input, shape index: {}]
  %s2 = inlined_call_operand.vmem [shape: s32[8], index: 2, kind: input, shape index: {}]
  %s3 = inlined_call_operand.hbm [shape: f32[16,128], index: 3, kind: input, shape index: {}]
  %s4 = inlined_call_operand.hbm [shape: f32[128,128], index: 4, kind: input, shape index: {}]
  %s5 = inlined_call_operand.hbm [shape: f32[128,128], index: 5, kind: input, shape index: {}]
  %s6 = inlined_call_operand.hbm [shape: bf16[384,128], index: 6, kind: input, shape index: {}]
  %s7 = inlined_call_operand.vmem [shape: f32[1,128], index: 7, kind: input, shape index: {}]
  %s8 = inlined_call_operand.hbm [shape: bf16[128,128], index: 8, kind: input, shape index: {}]
  %s9 = inlined_call_operand.vmem [shape: f32[1,128], index: 9, kind: input, shape index: {}]
  %s10 = inlined_call_operand.hbm [shape: bf16[128,128], index: 10, kind: input, shape index: {}]
  %s11 = inlined_call_operand.vmem [shape: f32[1,128], index: 11, kind: input, shape index: {}]
  %s12 = inlined_call_operand.hbm [shape: f32[8,128], index: 12, kind: output, shape index: {}]
  %s13 = sld [smem:[#allocation0]]
  $region92: #{tpu_custom_call.1} parent=0
    _
  %s15 = ssub.s32 1, %s13
  %s16 = scalar_select 0, %s15, %s13
  %18 = dma.hbm_to_smem %s0, 16, [#allocation6], [#allocation5]
  %s19 = sshll.u32 %s1, 4
  %s20 = int_to_ptr.vmem [resolvable:$true] %s19
  %22 = dma.vmem_to_smem %s20, 16, [#allocation7], [#allocation5]
  %s23 = sshll.u32 %s2, 4
  %s24 = int_to_ptr.vmem [resolvable:$true] %s23
  %26 = dma.vmem_to_smem %s24, 16, [#allocation8], [#allocation5]
  %27 = dma.done [#allocation5], 48
  %28 = sfence
  $region1: #{tpu_custom_call.1} parent=0
    #allocation9 [shape = 'u8[98304]{0}', space=vmem, size = 0x18000, scoped, tag = 'input window, operand 6, single buffered']
    #allocation10 [shape = 's32[1]{0}', space=sflag, size = 0x4, scoped, tag = 'scoped memory for tpu_custom_call.1']
    #allocation11 [shape = 's32[1]{0}', space=sflag, size = 0x4, scoped, tag = 'scoped memory for tpu_custom_call.1']
    #allocation12 [shape = 'u8[32768]{0}', space=vmem, size = 0x8000, scoped, tag = 'input window, operand 8, single buffered']
    #allocation13 [shape = 's32[1]{0}', space=sflag, size = 0x4, scoped, tag = 'scoped memory for tpu_custom_call.1']
    #allocation14 [shape = 'u8[32768]{0}', space=vmem, size = 0x8000, scoped, tag = 'input window, operand 10, single buffered']
    #allocation15 [shape = 'u8[4096]{0}', space=vmem, size = 0x1000, scoped, tag = 'output window, operand 0, single buffered']
    %29 = vsyncpa [#allocation10], 0
    %30 = vsyncpa [#allocation13], 0
    %31 = vsyncpa [#allocation11], 0
    // Predicated region
    $region2: #{tpu_custom_call.1} parent=1 // pred_check
      _
    $region3: #{tpu_custom_call.1} parent=1 // pred_check_branch
      %33 = sbr.rel (0) target = $region5
    $region4: #{tpu_custom_call.1} parent=1 // pred_region
      %s35 = ssub.s32 3072, 3072
      %36 = vsyncadd [#allocation10], %s35
      %s37 = sshll.u32 [#allocation9], 4
      %s38 = int_to_ptr.vmem [resolvable:$true] %s37
      %43 = dma.hbm_to_vmem [thread:$0]  %s6, 3072, %s38, [#allocation10], 64, 64, 4
    $region5: #{tpu_custom_call.1} parent=1 // pred_fallthru
      _
    // Predicated region
    $region6: #{tpu_custom_call.1} parent=1 // pred_check
      _
    $region7: #{tpu_custom_call.1} parent=1 // pred_check_branch
      %45 = sbr.rel (0) target = $region9
    $region8: #{tpu_custom_call.1} parent=1 // pred_region
      _
    $region9: #{tpu_custom_call.1} parent=1 // pred_fallthru
      _
    // Predicated region
    $region10: #{tpu_custom_call.1} parent=1 // pred_check
      _
    $region11: #{tpu_custom_call.1} parent=1 // pred_check_branch
      %47 = sbr.rel (0) target = $region13
    $region12: #{tpu_custom_call.1} parent=1 // pred_region
      %s49 = ssub.s32 1024, 1024
      %50 = vsyncadd [#allocation13], %s49
      %s51 = sshll.u32 [#allocation12], 4
      %s52 = int_to_ptr.vmem [resolvable:$true] %s51
      %57 = dma.hbm_to_vmem [thread:$0]  %s8, 1024, %s52, [#allocation13], 64, 64, 4
    $region13: #{tpu_custom_call.1} parent=1 // pred_fallthru
      _
    // Predicated region
    $region14: #{tpu_custom_call.1} parent=1 // pred_check
      _
    $region15: #{tpu_custom_call.1} parent=1 // pred_check_branch
      %59 = sbr.rel (0) target = $region17
    $region16: #{tpu_custom_call.1} parent=1 // pred_region
      _
    $region17: #{tpu_custom_call.1} parent=1 // pred_fallthru
      _
    // Predicated region
    $region18: #{tpu_custom_call.1} parent=1 // pred_check
      _
    $region19: #{tpu_custom_call.1} parent=1 // pred_check_branch
      %61 = sbr.rel (0) target = $region21
    $region20: #{tpu_custom_call.1} parent=1 // pred_region
      %s63 = ssub.s32 1024, 1024
      %64 = vsyncadd [#allocation13], %s63
      %s65 = sshll.u32 [#allocation14], 4
      %s66 = int_to_ptr.vmem [resolvable:$true] %s65
      %71 = dma.hbm_to_vmem [thread:$0]  %s10, 1024, %s66, [#allocation13], 64, 64, 4
    $region21: #{tpu_custom_call.1} parent=1 // pred_fallthru
      _
    // Predicated region
    $region22: #{tpu_custom_call.1} parent=1 // pred_check
      _
    $region23: #{tpu_custom_call.1} parent=1 // pred_check_branch
      %73 = sbr.rel (0) target = $region25
    $region24: #{tpu_custom_call.1} parent=1 // pred_region
      _
    $region25: #{tpu_custom_call.1} parent=1 // pred_fallthru
      _
    // Predicated region
    $region26: #{tpu_custom_call.1} parent=1 // pred_check
      _
    $region27: #{tpu_custom_call.1} parent=1 // pred_check_branch
      %75 = sbr.rel (0) target = $region29
    $region28: #{tpu_custom_call.1} parent=1 // pred_region
      %76 = dma.done [#allocation10], 3072
    $region29: #{tpu_custom_call.1} parent=1 // pred_fallthru
      _
    // Predicated region
    $region30: #{tpu_custom_call.1} parent=1 // pred_check
      _
    $region31: #{tpu_custom_call.1} parent=1 // pred_check_branch
      %78 = sbr.rel (0) target = $region33
    $region32: #{tpu_custom_call.1} parent=1 // pred_region
      %79 = dma.done [#allocation13], 1024
    $region33: #{tpu_custom_call.1} parent=1 // pred_fallthru
      _
    // Predicated region
    $region34: #{tpu_custom_call.1} parent=1 // pred_check
      _
    $region35: #{tpu_custom_call.1} parent=1 // pred_check_branch
      %81 = sbr.rel (0) target = $region37
    $region36: #{tpu_custom_call.1} parent=1 // pred_region
      %82 = dma.done [#allocation13], 1024
    $region37: #{tpu_custom_call.1} parent=1 // pred_fallthru
      _
    %p84 = scmp.eq.s32.totalorder 0, 0
    // Predicated region
    $region38: #{tpu_custom_call.1} parent=1 // pred_check
      %p85 = pneg %p84
    $region39: #{tpu_custom_call.1} parent=1 // pred_check_branch
      %87 = sbr.rel (%p85) target = $region41
    $region40: #{tpu_custom_call.1} parent=1 // pred_region
      loop: start=0, step=1, limit=8
      $region42: #{tpu_custom_call.1} parent=40 // loop_pre_header
        _
      $region43: #{tpu_custom_call.1} parent=40 // loop_header
        %s89 = sphi 0, %s93
        %p90 = scmp.ge.s32.totalorder %s89, 8
      $region44: #{tpu_custom_call.1} parent=40 // loop_header_branch
        %92 = sbr.rel (%p90) target = $region48
      $region45: #{tpu_custom_call.1} parent=40 // loop_body
        %s94 = smul.u32 0, 8
        %s95 = sadd.s32 %s94, %s89
        %p96 = scmp.lt.s32.totalorder %s89, 0
        %s97 = ssub.s32 0, %s89
        %s98 = scalar_select %p96, %s97, %s89
        %s99 = sand.u32 %s98, 7
        %s100 = ssub.s32 0, %s99
        %s101 = scalar_select %p96, %s100, %s99
        %p102 = scmp.ne.s32.totalorder %s101, 0
        %p103 = scmp.lt.s32.totalorder %s101, 0
        %p104 = pnand %p103, %p102
        %p105 = pneg %p104
        %s106 = sadd.s32 %s101, 8
        %s107 = scalar_select %p105, %s106, %s101
        %s108 = sld [smem:[#allocation6 + %s95]]
        %s109 = smul.addr %s108, 16
        %s110 = scalar_lea.hbm %s3, %s109
        %s111 = sshrl.u32 %s89, 3
        %s112 = sand.u32 %s89, 7
        %s113 = smul.u32 %s111, 24
        %s114 = sadd.s32 %s112, %s113
        %s115 = scalar_lea.vmem [#allocation2], %s114
        %s116 = smul.u32 %s107, 3
        %s117 = scalar_lea.sflag [#allocation4], %s116
        // Predicated region
        $region49: #{tpu_custom_call.1} parent=45 // pred_check
          _
        $region50: #{tpu_custom_call.1} parent=45 // pred_check_branch
          %119 = sbr.rel target = $region52
        $region51: #{tpu_custom_call.1} parent=45 // pred_region
          %120 = sst [smem:[#allocation18]] [#allocation17]
          %121 = sst [smem:[#allocation19]] [#allocation16]
        $region52: #{tpu_custom_call.1} parent=45 // pred_fallthru
          _
        %123 = shalt.err (0)
        %s125 = sshll.u32 %s115, 4
        %s126 = int_to_ptr.vmem [resolvable:$true] %s125
        %128 = dma.hbm_to_vmem [thread:$0]  %s110, 16, %s126, %s117
        %s129 = sld [smem:[#allocation7 + %s95]]
        %s130 = smul.addr %s129, 16
        %s131 = scalar_lea.hbm %s4, %s130
        %s132 = sadd.s32 8, %s114
        %s133 = scalar_lea.vmem [#allocation2], %s132
        %s134 = sadd.s32 1, %s116
        %s135 = scalar_lea.sflag [#allocation4], %s134
        // Predicated region
        $region53: #{tpu_custom_call.1} parent=45 // pred_check
          _
        $region54: #{tpu_custom_call.1} parent=45 // pred_check_branch
          %137 = sbr.rel target = $region56
        $region55: #{tpu_custom_call.1} parent=45 // pred_region
          %138 = sst [smem:[#allocation18]] [#allocation21]
          %139 = sst [smem:[#allocation19]] [#allocation20]
        $region56: #{tpu_custom_call.1} parent=45 // pred_fallthru
          _
        %141 = shalt.err (0)
        %s143 = sshll.u32 %s133, 4
        %s144 = int_to_ptr.vmem [resolvable:$true] %s143
        %146 = dma.hbm_to_vmem [thread:$0]  %s131, 16, %s144, %s135
        %s147 = sld [smem:[#allocation8 + %s95]]
        %s148 = smul.addr %s147, 16
        %s149 = scalar_lea.hbm %s5, %s148
        %s150 = sadd.s32 16, %s114
        %s151 = scalar_lea.vmem [#allocation2], %s150
        %s152 = sadd.s32 2, %s116
        %s153 = scalar_lea.sflag [#allocation4], %s152
        // Predicated region
        $region57: #{tpu_custom_call.1} parent=45 // pred_check
          _
        $region58: #{tpu_custom_call.1} parent=45 // pred_check_branch
          %155 = sbr.rel target = $region60
        $region59: #{tpu_custom_call.1} parent=45 // pred_region
          %156 = sst [smem:[#allocation18]] [#allocation23]
          %157 = sst [smem:[#allocation19]] [#allocation22]
        $region60: #{tpu_custom_call.1} parent=45 // pred_fallthru
          _
        %159 = shalt.err (0)
        %s161 = sshll.u32 %s151, 4
        %s162 = int_to_ptr.vmem [resolvable:$true] %s161
        %164 = dma.hbm_to_vmem [thread:$0]  %s149, 16, %s162, %s153
      $region46: #{tpu_custom_call.1} parent=40 // loop_footer
        %s93 = sadd.s32 1, %s89
      $region47: #{tpu_custom_call.1} parent=40 // loop_footer_branch
        %88 = sbr.rel target = $region43
      $region48: #{tpu_custom_call.1} parent=40 // loop_exit
        _
      loop: start=0, step=1, limit=8
      $region61: #{tpu_custom_call.1} parent=40 // loop_pre_header
        _
      $region62: #{tpu_custom_call.1} parent=40 // loop_header
        %s166 = sphi 0, %s170
        %p167 = scmp.ge.s32.totalorder %s166, 8
      $region63: #{tpu_custom_call.1} parent=40 // loop_header_branch
        %169 = sbr.rel (%p167) target = $region67
      $region64: #{tpu_custom_call.1} parent=40 // loop_body
        %p171 = scmp.lt.s32.totalorder %s166, 0
        %s172 = ssub.s32 0, %s166
        %s173 = scalar_select %p171, %s172, %s166
        %s174 = sand.u32 %s173, 7
        %s175 = ssub.s32 0, %s174
        %s176 = scalar_select %p171, %s175, %s174
        %p177 = scmp.ne.s32.totalorder %s176, 0
        %p178 = scmp.lt.s32.totalorder %s176, 0
        %p179 = pnand %p178, %p177
        %p180 = pneg %p179
        %s181 = sadd.s32 %s176, 8
        %s182 = scalar_select %p180, %s181, %s176
        %s183 = smul.u32 %s182, 3
        %s184 = scalar_lea.sflag [#allocation4], %s183
        %186 = dma.done %s184, 16
        %s187 = sadd.s32 1, %s183
        %s188 = scalar_lea.sflag [#allocation4], %s187
        %190 = dma.done %s188, 16
        %s191 = sadd.s32 2, %s183
        %s192 = scalar_lea.sflag [#allocation4], %s191
        %194 = dma.done %s192, 16
        %s195 = sadd.s32 %s166, 8
        %p196 = scmp.lt.s32.totalorder %s195, 8
        // Predicated region
        $region68: #{tpu_custom_call.1} parent=64 // pred_check
          %p197 = pneg %p196
        $region69: #{tpu_custom_call.1} parent=64 // pred_check_branch
          %199 = sbr.rel (%p197) target = $region71
        $region70: #{tpu_custom_call.1} parent=64 // pred_region
          %s200 = smul.u32 0, 8
          %s201 = sadd.s32 %s200, %s195
          %p202 = scmp.lt.s32.totalorder %s195, 0
          %s203 = ssub.s32 0, %s195
          %s204 = scalar_select %p202, %s203, %s195
          %s205 = sand.u32 %s204, 7
          %s206 = ssub.s32 0, %s205
          %s207 = scalar_select %p202, %s206, %s205
          %p208 = scmp.ne.s32.totalorder %s207, 0
          %p209 = scmp.lt.s32.totalorder %s207, 0
          %p210 = pnand %p209, %p208
          %p211 = pneg %p210
          %s212 = sadd.s32 %s207, 8
          %s213 = scalar_select %p211, %s212, %s207
          %s214 = sld [smem:[#allocation6 + %s201]]
          %s215 = smul.addr %s214, 16
          %s216 = scalar_lea.hbm %s3, %s215
          %s217 = sshrl.u32 %s195, 3
          %s218 = sand.u32 %s195, 7
          %s219 = smul.u32 %s217, 24
          %s220 = sadd.s32 %s218, %s219
          %s221 = scalar_lea.vmem [#allocation2], %s220
          %s222 = smul.u32 %s213, 3
          %s223 = scalar_lea.sflag [#allocation4], %s222
          // Predicated region
          $region72: #{tpu_custom_call.1} parent=70 // pred_check
            _
          $region73: #{tpu_custom_call.1} parent=70 // pred_check_branch
            %225 = sbr.rel target = $region75
          $region74: #{tpu_custom_call.1} parent=70 // pred_region
            %226 = sst [smem:[#allocation18]] [#allocation25]
            %227 = sst [smem:[#allocation19]] [#allocation24]
          $region75: #{tpu_custom_call.1} parent=70 // pred_fallthru
            _
          %229 = shalt.err (0)
          %s231 = sshll.u32 %s221, 4
          %s232 = int_to_ptr.vmem [resolvable:$true] %s231
          %234 = dma.hbm_to_vmem [thread:$0]  %s216, 16, %s232, %s223
          %s235 = sld [smem:[#allocation7 + %s201]]
          %s236 = smul.addr %s235, 16
          %s237 = scalar_lea.hbm %s4, %s236
          %s238 = sadd.s32 8, %s220
          %s239 = scalar_lea.vmem [#allocation2], %s238
          %s240 = sadd.s32 1, %s222
          %s241 = scalar_lea.sflag [#allocation4], %s240
          // Predicated region
          $region76: #{tpu_custom_call.1} parent=70 // pred_check
            _
          $region77: #{tpu_custom_call.1} parent=70 // pred_check_branch
            %243 = sbr.rel target = $region79
          $region78: #{tpu_custom_call.1} parent=70 // pred_region
            %244 = sst [smem:[#allocation18]] [#allocation27]
            %245 = sst [smem:[#allocation19]] [#allocation26]
          $region79: #{tpu_custom_call.1} parent=70 // pred_fallthru
            _
          %247 = shalt.err (0)
          %s249 = sshll.u32 %s239, 4
          %s250 = int_to_ptr.vmem [resolvable:$true] %s249
          %252 = dma.hbm_to_vmem [thread:$0]  %s237, 16, %s250, %s241
          %s253 = sld [smem:[#allocation8 + %s201]]
          %s254 = smul.addr %s253, 16
          %s255 = scalar_lea.hbm %s5, %s254
          %s256 = sadd.s32 16, %s220
          %s257 = scalar_lea.vmem [#allocation2], %s256
          %s258 = sadd.s32 2, %s222
          %s259 = scalar_lea.sflag [#allocation4], %s258
          // Predicated region
          $region80: #{tpu_custom_call.1} parent=70 // pred_check
            _
          $region81: #{tpu_custom_call.1} parent=70 // pred_check_branch
            %261 = sbr.rel target = $region83
          $region82: #{tpu_custom_call.1} parent=70 // pred_region
            %262 = sst [smem:[#allocation18]] [#allocation29]
            %263 = sst [smem:[#allocation19]] [#allocation28]
          $region83: #{tpu_custom_call.1} parent=70 // pred_fallthru
            _
          %265 = shalt.err (0)
          %s267 = sshll.u32 %s257, 4
          %s268 = int_to_ptr.vmem [resolvable:$true] %s267
          %270 = dma.hbm_to_vmem [thread:$0]  %s255, 16, %s268, %s259
        $region71: #{tpu_custom_call.1} parent=64 // pred_fallthru
          _
      $region65: #{tpu_custom_call.1} parent=40 // loop_footer
        %s170 = sadd.s32 1, %s166
      $region66: #{tpu_custom_call.1} parent=40 // loop_footer_branch
        %165 = sbr.rel target = $region62
      $region67: #{tpu_custom_call.1} parent=40 // loop_exit
        _
      %v271 = vld [vmem:[#allocation2] sm:$0xff]
      %v272 = vld [vmem:[#allocation2 + $0x8] sm:$0xff]
      %v273 = vld [vmem:[#allocation2 + $0x10] sm:$0xff]
      %v274 = vpack.c.bf16 %v271, %v271
      %v275 = vpack.c.bf16 %v272, %v272
      %v276 = vpack.c.bf16 %v273, %v273
      %v277 = vld [vmem:[#allocation9] sm:$0xf]
      %v278 = vld [vmem:[#allocation9 + $0x4] sm:$0xf]
      %v279 = vld [vmem:[#allocation9 + $0x8] sm:$0xf]
      %v280 = vld [vmem:[#allocation9 + $0xc] sm:$0xf]
      %v281 = vld [vmem:[#allocation9 + $0x10] sm:$0xf]
      %v282 = vld [vmem:[#allocation9 + $0x14] sm:$0xf]
      %v283 = vld [vmem:[#allocation9 + $0x18] sm:$0xf]
      %v284 = vld [vmem:[#allocation9 + $0x1c] sm:$0xf]
      %v285 = vld [vmem:[#allocation9 + $0x20] sm:$0xf]
      %v286 = vld [vmem:[#allocation9 + $0x24] sm:$0xf]
      %v287 = vld [vmem:[#allocation9 + $0x28] sm:$0xf]
      %v288 = vld [vmem:[#allocation9 + $0x2c] sm:$0xf]
      %v289 = vld [vmem:[#allocation9 + $0x30] sm:$0xf]
      %v290 = vld [vmem:[#allocation9 + $0x34] sm:$0xf]
      %v291 = vld [vmem:[#allocation9 + $0x38] sm:$0xf]
      %v292 = vld [vmem:[#allocation9 + $0x3c] sm:$0xf]
      %v293 = vld [vmem:[#allocation9 + $0x40] sm:$0xf]
      %v294 = vld [vmem:[#allocation9 + $0x44] sm:$0xf]
      %v295 = vld [vmem:[#allocation9 + $0x48] sm:$0xf]
      %v296 = vld [vmem:[#allocation9 + $0x4c] sm:$0xf]
      %v297 = vld [vmem:[#allocation9 + $0x50] sm:$0xf]
      %v298 = vld [vmem:[#allocation9 + $0x54] sm:$0xf]
      %v299 = vld [vmem:[#allocation9 + $0x58] sm:$0xf]
      %v300 = vld [vmem:[#allocation9 + $0x5c] sm:$0xf]
      %v301 = vld [vmem:[#allocation9 + $0x60] sm:$0xf]
      %v302 = vld [vmem:[#allocation9 + $0x64] sm:$0xf]
      %v303 = vld [vmem:[#allocation9 + $0x68] sm:$0xf]
      %v304 = vld [vmem:[#allocation9 + $0x6c] sm:$0xf]
      %v305 = vld [vmem:[#allocation9 + $0x70] sm:$0xf]
      %v306 = vld [vmem:[#allocation9 + $0x74] sm:$0xf]
      %v307 = vld [vmem:[#allocation9 + $0x78] sm:$0xf]
      %v308 = vld [vmem:[#allocation9 + $0x7c] sm:$0xf]
      %v309 = vld [vmem:[#allocation9 + $0x80] sm:$0xf]
      %v310 = vld [vmem:[#allocation9 + $0x84] sm:$0xf]
      %v311 = vld [vmem:[#allocation9 + $0x88] sm:$0xf]
      %v312 = vld [vmem:[#allocation9 + $0x8c] sm:$0xf]
      %v313 = vld [vmem:[#allocation9 + $0x90] sm:$0xf]
      %v314 = vld [vmem:[#allocation9 + $0x94] sm:$0xf]
      %v315 = vld [vmem:[#allocation9 + $0x98] sm:$0xf]
      %v316 = vld [vmem:[#allocation9 + $0x9c] sm:$0xf]
      %v317 = vld [vmem:[#allocation9 + $0xa0] sm:$0xf]
      %v318 = vld [vmem:[#allocation9 + $0xa4] sm:$0xf]
      %v319 = vld [vmem:[#allocation9 + $0xa8] sm:$0xf]
      %v320 = vld [vmem:[#allocation9 + $0xac] sm:$0xf]
      %v321 = vld [vmem:[#allocation9 + $0xb0] sm:$0xf]
      %v322 = vld [vmem:[#allocation9 + $0xb4] sm:$0xf]
      %v323 = vld [vmem:[#allocation9 + $0xb8] sm:$0xf]
      %v324 = vld [vmem:[#allocation9 + $0xbc] sm:$0xf]
      %v325 = vld [vmem:[%s7] sm:$0x1]
      %v327 = vlaneseq
      %v328 = vshrl.u32 %v327, 7
      %v329 = vsub.s32 0, %v328
      %v330 = vrot.slane %v325, %v329
      %v380 = vunpack.c.l.b16 %v277
      %v381 = vunpack.c.l.b16 %v278
      %v382 = vunpack.c.l.b16 %v279
      %v383 = vunpack.c.l.b16 %v280
      %v384 = vunpack.c.l.b16 %v281
      %v385 = vunpack.c.l.b16 %v282
      %v386 = vunpack.c.l.b16 %v283
      %v387 = vunpack.c.l.b16 %v284
      %v388 = vunpack.c.l.b16 %v285
      %v389 = vunpack.c.l.b16 %v286
      %v390 = vunpack.c.l.b16 %v287
      %v391 = vunpack.c.l.b16 %v288
      %v392 = vunpack.c.l.b16 %v289
      %v393 = vunpack.c.l.b16 %v290
      %v394 = vunpack.c.l.b16 %v291
      %v395 = vunpack.c.l.b16 %v292
      %v396 = vunpack.c.l.b16 %v293
      %v397 = vunpack.c.l.b16 %v294
      %v398 = vunpack.c.l.b16 %v295
      %v399 = vunpack.c.l.b16 %v296
      %v400 = vunpack.c.l.b16 %v297
      %v401 = vunpack.c.l.b16 %v298
      %v402 = vunpack.c.l.b16 %v299
      %v403 = vunpack.c.l.b16 %v300
      %v404 = vunpack.c.l.b16 %v301
      %v405 = vunpack.c.l.b16 %v302
      %v406 = vunpack.c.l.b16 %v303
      %v407 = vunpack.c.l.b16 %v304
      %v408 = vunpack.c.l.b16 %v305
      %v409 = vunpack.c.l.b16 %v306
      %v410 = vunpack.c.l.b16 %v307
      %v411 = vunpack.c.l.b16 %v308
      %v412 = vunpack.c.l.b16 %v309
      %v413 = vunpack.c.l.b16 %v310
      %v414 = vunpack.c.l.b16 %v311
      %v415 = vunpack.c.l.b16 %v312
      %v416 = vunpack.c.l.b16 %v313
      %v417 = vunpack.c.l.b16 %v314
      %v418 = vunpack.c.l.b16 %v315
      %v419 = vunpack.c.l.b16 %v316
      %v420 = vunpack.c.l.b16 %v317
      %v421 = vunpack.c.l.b16 %v318
      %v422 = vunpack.c.l.b16 %v319
      %v423 = vunpack.c.l.b16 %v320
      %v424 = vunpack.c.l.b16 %v321
      %v425 = vunpack.c.l.b16 %v322
      %v426 = vunpack.c.l.b16 %v323
      %v427 = vunpack.c.l.b16 %v324
      %v428 = vpack.c.b16 %v381, %v380
      %v429 = vpack.c.b16 %v383, %v382
      %v430 = vpack.c.b16 %v385, %v384
      %v431 = vpack.c.b16 %v387, %v386
      %v432 = vpack.c.b16 %v389, %v388
      %v433 = vpack.c.b16 %v391, %v390
      %v434 = vpack.c.b16 %v393, %v392
      %v435 = vpack.c.b16 %v395, %v394
      %v436 = vpack.c.b16 %v397, %v396
      %v437 = vpack.c.b16 %v399, %v398
      %v438 = vpack.c.b16 %v401, %v400
      %v439 = vpack.c.b16 %v403, %v402
      %v440 = vpack.c.b16 %v405, %v404
      %v441 = vpack.c.b16 %v407, %v406
      %v442 = vpack.c.b16 %v409, %v408
      %v443 = vpack.c.b16 %v411, %v410
      %v444 = vpack.c.b16 %v413, %v412
      %v445 = vpack.c.b16 %v415, %v414
      %v446 = vpack.c.b16 %v417, %v416
      %v447 = vpack.c.b16 %v419, %v418
      %v448 = vpack.c.b16 %v421, %v420
      %v449 = vpack.c.b16 %v423, %v422
      %v450 = vpack.c.b16 %v425, %v424
      %v451 = vpack.c.b16 %v427, %v426
      %476 = vmatprep.subr.bf16.mxu0 0
      %477 = vmatpush1.bf16.msra.mxu0 %v428
      %478 = vmatprep.subr.bf16.mxu0 0
      %479 = vmatpush1.bf16.msra.mxu0 %v429
      %480 = vmatprep.subr.bf16.mxu0 0
      %481 = vmatpush1.bf16.msra.mxu0 %v430
      %482 = vmatprep.subr.bf16.mxu0 0
      %483 = vmatpush1.bf16.msra.mxu0 %v431
      %484 = vmatprep.subr.bf16.mxu0 0
      %485 = vmatpush1.bf16.msra.mxu0 %v432
      %486 = vmatprep.subr.bf16.mxu0 0
      %487 = vmatpush1.bf16.msra.mxu0 %v433
      %488 = vmatprep.subr.bf16.mxu0 0
      %489 = vmatpush1.bf16.msra.mxu0 %v434
      %490 = vmatprep.subr.bf16.mxu0 0
      %491 = vmatpush1.bf16.msra.mxu0 %v435
      %492 = vmatprep.subr.bf16.mxu0 0
      %493 = vmatpush1.bf16.msra.mxu0 %v436
      %494 = vmatprep.subr.bf16.mxu0 0
      %495 = vmatpush1.bf16.msra.mxu0 %v437
      %496 = vmatprep.subr.bf16.mxu0 0
      %497 = vmatpush1.bf16.msra.mxu0 %v438
      %498 = vmatprep.subr.bf16.mxu0 0
      %499 = vmatpush1.bf16.msra.mxu0 %v439
      %500 = vmatprep.subr.bf16.mxu0 0
      %501 = vmatpush1.bf16.msra.mxu0 %v440
      %502 = vmatprep.subr.bf16.mxu0 0
      %503 = vmatpush1.bf16.msra.mxu0 %v441
      %504 = vmatprep.subr.bf16.mxu0 0
      %505 = vmatpush1.bf16.msra.mxu0 %v442
      %506 = vmatprep.subr.bf16.mxu0 0
      %507 = vmatpush1.bf16.msra.mxu0 %v443
      %508 = vmatprep.mubr.bf16.mxu0 %v275
      %509 = vmatmul.mubr.bf16.gmra.mrb[0].mxu0 %v274
      %v510 = vpop.f32.mrb[0].mxu0
      %v511 = vadd.f32 %v330, %v510
      %v512 = vpop.f32.mrb[0].mxu0
      %v513 = vpop.f32.mrb[0].mxu0
      %v514 = vpop.f32.mrb[0].mxu0
      %515 = vdwg.mxu0
      %516 = vmatprep.subr.bf16.mxu0 0
      %517 = vmatpush1.bf16.msra.mxu0 %v444
      %518 = vmatprep.subr.bf16.mxu0 0
      %519 = vmatpush1.bf16.msra.mxu0 %v445
      %520 = vmatprep.subr.bf16.mxu0 0
      %521 = vmatpush1.bf16.msra.mxu0 %v446
      %522 = vmatprep.subr.bf16.mxu0 0
      %523 = vmatpush1.bf16.msra.mxu0 %v447
      %524 = vmatprep.subr.bf16.mxu0 0
      %525 = vmatpush1.bf16.msra.mxu0 %v448
      %526 = vmatprep.subr.bf16.mxu0 0
      %527 = vmatpush1.bf16.msra.mxu0 %v449
      %528 = vmatprep.subr.bf16.mxu0 0
      %529 = vmatpush1.bf16.msra.mxu0 %v450
      %530 = vmatprep.subr.bf16.mxu0 0
      %531 = vmatpush1.bf16.msra.mxu0 %v451
      %532 = vmatprep.subr.bf16.mxu0 0
      %533 = vmatpush1.bf16.msra.mxu0 0
      %534 = vmatprep.subr.bf16.mxu0 0
      %535 = vmatpush1.bf16.msra.mxu0 0
      %536 = vmatprep.subr.bf16.mxu0 0
      %537 = vmatpush1.bf16.msra.mxu0 0
      %538 = vmatprep.subr.bf16.mxu0 0
      %539 = vmatpush1.bf16.msra.mxu0 0
      %540 = vmatprep.subr.bf16.mxu0 0
      %541 = vmatpush1.bf16.msra.mxu0 0
      %542 = vmatprep.subr.bf16.mxu0 0
      %543 = vmatpush1.bf16.msra.mxu0 0
      %544 = vmatprep.subr.bf16.mxu0 0
      %545 = vmatpush1.bf16.msra.mxu0 0
      %546 = vmatprep.subr.bf16.mxu0 0
      %547 = vmatpush1.bf16.msra.mxu0 0
      %548 = vmatprep.mubr.bf16.mxu0 0
      %549 = vmatmul.mubr.bf16.gmra.mrb[0].mxu0 %v276
      %v550 = vpop.f32.mrb[0].mxu0
      %v551 = vadd.f32 %v511, %v550
      %v552 = vpop.f32.mrb[0].mxu0
      %v553 = vpop.f32.mrb[0].mxu0
      %v554 = vpop.f32.mrb[0].mxu0
      %555 = vdwg.mxu0
      %v556 = vmax.f32 %v551, 0.0
      %v557 = vpack.c.bf16 %v556, %v556
      %v558 = vld [vmem:[#allocation12] sm:$0xf]
      %v559 = vld [vmem:[#allocation12 + $0x4] sm:$0xf]
      %v560 = vld [vmem:[#allocation12 + $0x8] sm:$0xf]
      %v561 = vld [vmem:[#allocation12 + $0xc] sm:$0xf]
      %v562 = vld [vmem:[#allocation12 + $0x10] sm:$0xf]
      %v563 = vld [vmem:[#allocation12 + $0x14] sm:$0xf]
      %v564 = vld [vmem:[#allocation12 + $0x18] sm:$0xf]
      %v565 = vld [vmem:[#allocation12 + $0x1c] sm:$0xf]
      %v566 = vld [vmem:[#allocation12 + $0x20] sm:$0xf]
      %v567 = vld [vmem:[#allocation12 + $0x24] sm:$0xf]
      %v568 = vld [vmem:[#allocation12 + $0x28] sm:$0xf]
      %v569 = vld [vmem:[#allocation12 + $0x2c] sm:$0xf]
      %v570 = vld [vmem:[#allocation12 + $0x30] sm:$0xf]
      %v571 = vld [vmem:[#allocation12 + $0x34] sm:$0xf]
      %v572 = vld [vmem:[#allocation12 + $0x38] sm:$0xf]
      %v573 = vld [vmem:[#allocation12 + $0x3c] sm:$0xf]
      %v574 = vld [vmem:[%s9] sm:$0x1]
      %v576 = vlaneseq
      %v577 = vshrl.u32 %v576, 7
      %v578 = vsub.s32 0, %v577
      %v579 = vrot.slane %v574, %v578
      %v597 = vunpack.c.l.b16 %v558
      %v598 = vunpack.c.l.b16 %v559
      %v599 = vunpack.c.l.b16 %v560
      %v600 = vunpack.c.l.b16 %v561
      %v601 = vunpack.c.l.b16 %v562
      %v602 = vunpack.c.l.b16 %v563
      %v603 = vunpack.c.l.b16 %v564
      %v604 = vunpack.c.l.b16 %v565
      %v605 = vunpack.c.l.b16 %v566
      %v606 = vunpack.c.l.b16 %v567
      %v607 = vunpack.c.l.b16 %v568
      %v608 = vunpack.c.l.b16 %v569
      %v609 = vunpack.c.l.b16 %v570
      %v610 = vunpack.c.l.b16 %v571
      %v611 = vunpack.c.l.b16 %v572
      %v612 = vunpack.c.l.b16 %v573
      %v613 = vpack.c.b16 %v598, %v597
      %v614 = vpack.c.b16 %v600, %v599
      %v615 = vpack.c.b16 %v602, %v601
      %v616 = vpack.c.b16 %v604, %v603
      %v617 = vpack.c.b16 %v606, %v605
      %v618 = vpack.c.b16 %v608, %v607
      %v619 = vpack.c.b16 %v610, %v609
      %v620 = vpack.c.b16 %v612, %v611
      %629 = vmatprep.subr.bf16.mxu0 0
      %630 = vmatpush1.bf16.msra.mxu0 %v613
      %631 = vmatprep.subr.bf16.mxu0 0
      %632 = vmatpush1.bf16.msra.mxu0 %v614
      %633 = vmatprep.subr.bf16.mxu0 0
      %634 = vmatpush1.bf16.msra.mxu0 %v615
      %635 = vmatprep.subr.bf16.mxu0 0
      %636 = vmatpush1.bf16.msra.mxu0 %v616
      %637 = vmatprep.subr.bf16.mxu0 0
      %638 = vmatpush1.bf16.msra.mxu0 %v617
      %639 = vmatprep.subr.bf16.mxu0 0
      %640 = vmatpush1.bf16.msra.mxu0 %v618
      %641 = vmatprep.subr.bf16.mxu0 0
      %642 = vmatpush1.bf16.msra.mxu0 %v619
      %643 = vmatprep.subr.bf16.mxu0 0
      %644 = vmatpush1.bf16.msra.mxu0 %v620
      %645 = vmatprep.subr.bf16.mxu0 0
      %646 = vmatpush1.bf16.msra.mxu0 0
      %647 = vmatprep.subr.bf16.mxu0 0
      %648 = vmatpush1.bf16.msra.mxu0 0
      %649 = vmatprep.subr.bf16.mxu0 0
      %650 = vmatpush1.bf16.msra.mxu0 0
      %651 = vmatprep.subr.bf16.mxu0 0
      %652 = vmatpush1.bf16.msra.mxu0 0
      %653 = vmatprep.subr.bf16.mxu0 0
      %654 = vmatpush1.bf16.msra.mxu0 0
      %655 = vmatprep.subr.bf16.mxu0 0
      %656 = vmatpush1.bf16.msra.mxu0 0
      %657 = vmatprep.subr.bf16.mxu0 0
      %658 = vmatpush1.bf16.msra.mxu0 0
      %659 = vmatprep.subr.bf16.mxu0 0
      %660 = vmatpush1.bf16.msra.mxu0 0
      %661 = vmatprep.mubr.bf16.mxu0 0
      %662 = vmatmul.mubr.bf16.gmra.mrb[0].mxu0 %v557
      %v663 = vpop.f32.mrb[0].mxu0
      %v664 = vadd.f32 %v579, %v663
      %v665 = vpop.f32.mrb[0].mxu0
      %v666 = vpop.f32.mrb[0].mxu0
      %v667 = vpop.f32.mrb[0].mxu0
      %668 = vdwg.mxu0
      %v669 = vmax.f32 %v664, 0.0
      %670 = vst [vmem:[#allocation3] sm:$0xff] %v669
    $region41: #{tpu_custom_call.1} parent=1 // pred_fallthru
      _
    %v671 = vld [vmem:[#allocation3] sm:$0xff]
    %v672 = vpack.c.bf16 %v671, %v671
    %v673 = vld [vmem:[#allocation14] sm:$0xf]
    %v674 = vld [vmem:[#allocation14 + $0x4] sm:$0xf]
    %v675 = vld [vmem:[#allocation14 + $0x8] sm:$0xf]
    %v676 = vld [vmem:[#allocation14 + $0xc] sm:$0xf]
    %v677 = vld [vmem:[#allocation14 + $0x10] sm:$0xf]
    %v678 = vld [vmem:[#allocation14 + $0x14] sm:$0xf]
    %v679 = vld [vmem:[#allocation14 + $0x18] sm:$0xf]
    %v680 = vld [vmem:[#allocation14 + $0x1c] sm:$0xf]
    %v681 = vld [vmem:[#allocation14 + $0x20] sm:$0xf]
    %v682 = vld [vmem:[#allocation14 + $0x24] sm:$0xf]
    %v683 = vld [vmem:[#allocation14 + $0x28] sm:$0xf]
    %v684 = vld [vmem:[#allocation14 + $0x2c] sm:$0xf]
    %v685 = vld [vmem:[#allocation14 + $0x30] sm:$0xf]
    %v686 = vld [vmem:[#allocation14 + $0x34] sm:$0xf]
    %v687 = vld [vmem:[#allocation14 + $0x38] sm:$0xf]
    %v688 = vld [vmem:[#allocation14 + $0x3c] sm:$0xf]
    %v689 = vld [vmem:[%s11] sm:$0x1]
    %v691 = vlaneseq
    %v692 = vshrl.u32 %v691, 7
    %v693 = vsub.s32 0, %v692
    %v694 = vrot.slane %v689, %v693
    %v712 = vunpack.c.l.b16 %v673
    %v713 = vunpack.c.l.b16 %v674
    %v714 = vunpack.c.l.b16 %v675
    %v715 = vunpack.c.l.b16 %v676
    %v716 = vunpack.c.l.b16 %v677
    %v717 = vunpack.c.l.b16 %v678
    %v718 = vunpack.c.l.b16 %v679
    %v719 = vunpack.c.l.b16 %v680
    %v720 = vunpack.c.l.b16 %v681
    %v721 = vunpack.c.l.b16 %v682
    %v722 = vunpack.c.l.b16 %v683
    %v723 = vunpack.c.l.b16 %v684
    %v724 = vunpack.c.l.b16 %v685
    %v725 = vunpack.c.l.b16 %v686
    %v726 = vunpack.c.l.b16 %v687
    %v727 = vunpack.c.l.b16 %v688
    %v728 = vpack.c.b16 %v713, %v712
    %v729 = vpack.c.b16 %v715, %v714
    %v730 = vpack.c.b16 %v717, %v716
    %v731 = vpack.c.b16 %v719, %v718
    %v732 = vpack.c.b16 %v721, %v720
    %v733 = vpack.c.b16 %v723, %v722
    %v734 = vpack.c.b16 %v725, %v724
    %v735 = vpack.c.b16 %v727, %v726
    %744 = vmatprep.subr.bf16.mxu0 0
    %745 = vmatpush1.bf16.msra.mxu0 %v728
    %746 = vmatprep.subr.bf16.mxu0 0
    %747 = vmatpush1.bf16.msra.mxu0 %v729
    %748 = vmatprep.subr.bf16.mxu0 0
    %749 = vmatpush1.bf16.msra.mxu0 %v730
    %750 = vmatprep.subr.bf16.mxu0 0
    %751 = vmatpush1.bf16.msra.mxu0 %v731
    %752 = vmatprep.subr.bf16.mxu0 0
    %753 = vmatpush1.bf16.msra.mxu0 %v732
    %754 = vmatprep.subr.bf16.mxu0 0
    %755 = vmatpush1.bf16.msra.mxu0 %v733
    %756 = vmatprep.subr.bf16.mxu0 0
    %757 = vmatpush1.bf16.msra.mxu0 %v734
    %758 = vmatprep.subr.bf16.mxu0 0
    %759 = vmatpush1.bf16.msra.mxu0 %v735
    %760 = vmatprep.subr.bf16.mxu0 0
    %761 = vmatpush1.bf16.msra.mxu0 0
    %762 = vmatprep.subr.bf16.mxu0 0
    %763 = vmatpush1.bf16.msra.mxu0 0
    %764 = vmatprep.subr.bf16.mxu0 0
    %765 = vmatpush1.bf16.msra.mxu0 0
    %766 = vmatprep.subr.bf16.mxu0 0
    %767 = vmatpush1.bf16.msra.mxu0 0
    %768 = vmatprep.subr.bf16.mxu0 0
    %769 = vmatpush1.bf16.msra.mxu0 0
    %770 = vmatprep.subr.bf16.mxu0 0
    %771 = vmatpush1.bf16.msra.mxu0 0
    %772 = vmatprep.subr.bf16.mxu0 0
    %773 = vmatpush1.bf16.msra.mxu0 0
    %774 = vmatprep.subr.bf16.mxu0 0
    %775 = vmatpush1.bf16.msra.mxu0 0
    %776 = vmatprep.mubr.bf16.mxu0 0
    %777 = vmatmul.mubr.bf16.gmra.mrb[0].mxu0 %v672
    %v778 = vpop.f32.mrb[0].mxu0
    %v779 = vadd.f32 %v694, %v778
    %v780 = vpop.f32.mrb[0].mxu0
    %v781 = vpop.f32.mrb[0].mxu0
    %v782 = vpop.f32.mrb[0].mxu0
    %783 = vdwg.mxu0
    %784 = vst [vmem:[#allocation15] sm:$0xff] %v779
    // Predicated region
    $region84: #{tpu_custom_call.1} parent=1 // pred_check
      _
    $region85: #{tpu_custom_call.1} parent=1 // pred_check_branch
      %786 = sbr.rel (0) target = $region87
    $region86: #{tpu_custom_call.1} parent=1 // pred_region
      %s788 = ssub.s32 128, 128
      %789 = vsyncadd [#allocation11], %s788
      %s791 = sshll.u32 [#allocation15], 4
      %s792 = int_to_ptr.vmem [resolvable:$true] %s791
      %794 = dma.vmem_to_hbm [thread:$0]  %s792, 128, %s12, [#allocation11]
    $region87: #{tpu_custom_call.1} parent=1 // pred_fallthru
      _
    // Predicated region
    $region88: #{tpu_custom_call.1} parent=1 // pred_check
      _
    $region89: #{tpu_custom_call.1} parent=1 // pred_check_branch
      %796 = sbr.rel (0) target = $region91
    $region90: #{tpu_custom_call.1} parent=1 // pred_region
      %797 = dma.done [#allocation11], 128
    $region91: #{tpu_custom_call.1} parent=1 // pred_fallthru
      _
    %798 = vsyncpa [#allocation10], 1
    %799 = vsyncpa [#allocation13], 1
    %800 = vsyncpa [#allocation11], 1
  %801 = vsyncmov [#allocation4]
  %s802 = vpop.sfrf %801
  %p803 = scmp.eq.s32.totalorder %s802, 0
  %p804 = pneg %p803
  %806 = shalt.err (%p804)
  %s807 = scalar_lea.sflag [#allocation4], 1
  %808 = vsyncmov %s807
  %s809 = vpop.sfrf %808
  %p810 = scmp.eq.s32.totalorder %s809, 0
  %p811 = pneg %p810
  %813 = shalt.err (%p811)
  %s814 = scalar_lea.sflag [#allocation4], 2
  %815 = vsyncmov %s814
  %s816 = vpop.sfrf %815
  %p817 = scmp.eq.s32.totalorder %s816, 0
  %p818 = pneg %p817
  %820 = shalt.err (%p818)
  %s821 = scalar_lea.sflag [#allocation4], 3
  %822 = vsyncmov %s821
  %s823 = vpop.sfrf %822
  %p824 = scmp.eq.s32.totalorder %s823, 0
  %p825 = pneg %p824
  %827 = shalt.err (%p825)
  %s828 = scalar_lea.sflag [#allocation4], 4
  %829 = vsyncmov %s828
  %s830 = vpop.sfrf %829
  %p831 = scmp.eq.s32.totalorder %s830, 0
  %p832 = pneg %p831
  %834 = shalt.err (%p832)
  %s835 = scalar_lea.sflag [#allocation4], 5
  %836 = vsyncmov %s835
  %s837 = vpop.sfrf %836
  %p838 = scmp.eq.s32.totalorder %s837, 0
  %p839 = pneg %p838
  %841 = shalt.err (%p839)
  %s842 = scalar_lea.sflag [#allocation4], 6
  %843 = vsyncmov %s842
  %s844 = vpop.sfrf %843
  %p845 = scmp.eq.s32.totalorder %s844, 0
  %p846 = pneg %p845
  %848 = shalt.err (%p846)
  %s849 = scalar_lea.sflag [#allocation4], 7
  %850 = vsyncmov %s849
  %s851 = vpop.sfrf %850
  %p852 = scmp.eq.s32.totalorder %s851, 0
  %p853 = pneg %p852
  %855 = shalt.err (%p853)
  %s856 = scalar_lea.sflag [#allocation4], 8
  %857 = vsyncmov %s856
  %s858 = vpop.sfrf %857
  %p859 = scmp.eq.s32.totalorder %s858, 0
  %p860 = pneg %p859
  %862 = shalt.err (%p860)
  %s863 = scalar_lea.sflag [#allocation4], 9
  %864 = vsyncmov %s863
  %s865 = vpop.sfrf %864
  %p866 = scmp.eq.s32.totalorder %s865, 0
  %p867 = pneg %p866
  %869 = shalt.err (%p867)
  %s870 = scalar_lea.sflag [#allocation4], 10
  %871 = vsyncmov %s870
  %s872 = vpop.sfrf %871
  %p873 = scmp.eq.s32.totalorder %s872, 0
  %p874 = pneg %p873
  %876 = shalt.err (%p874)
  %s877 = scalar_lea.sflag [#allocation4], 11
  %878 = vsyncmov %s877
  %s879 = vpop.sfrf %878
  %p880 = scmp.eq.s32.totalorder %s879, 0
  %p881 = pneg %p880
  %883 = shalt.err (%p881)
  %s884 = scalar_lea.sflag [#allocation4], 12
  %885 = vsyncmov %s884
  %s886 = vpop.sfrf %885
  %p887 = scmp.eq.s32.totalorder %s886, 0
  %p888 = pneg %p887
  %890 = shalt.err (%p888)
  %s891 = scalar_lea.sflag [#allocation4], 13
  %892 = vsyncmov %s891
  %s893 = vpop.sfrf %892
  %p894 = scmp.eq.s32.totalorder %s893, 0
  %p895 = pneg %p894
  %897 = shalt.err (%p895)
  %s898 = scalar_lea.sflag [#allocation4], 14
  %899 = vsyncmov %s898
  %s900 = vpop.sfrf %899
  %p901 = scmp.eq.s32.totalorder %s900, 0
  %p902 = pneg %p901
  %904 = shalt.err (%p902)
  %s905 = scalar_lea.sflag [#allocation4], 15
  %906 = vsyncmov %s905
  %s907 = vpop.sfrf %906
  %p908 = scmp.eq.s32.totalorder %s907, 0
  %p909 = pneg %p908
  %911 = shalt.err (%p909)
  %s912 = scalar_lea.sflag [#allocation4], 16
  %913 = vsyncmov %s912
  %s914 = vpop.sfrf %913
  %p915 = scmp.eq.s32.totalorder %s914, 0
  %p916 = pneg %p915
  %918 = shalt.err (%p916)
  %s919 = scalar_lea.sflag [#allocation4], 17
  %920 = vsyncmov %s919
  %s921 = vpop.sfrf %920
  %p922 = scmp.eq.s32.totalorder %s921, 0
  %p923 = pneg %p922
  %925 = shalt.err (%p923)
  %s926 = scalar_lea.sflag [#allocation4], 18
  %927 = vsyncmov %s926
  %s928 = vpop.sfrf %927
  %p929 = scmp.eq.s32.totalorder %s928, 0
  %p930 = pneg %p929
  %932 = shalt.err (%p930)
  %s933 = scalar_lea.sflag [#allocation4], 19
  %934 = vsyncmov %s933
  %s935 = vpop.sfrf %934
  %p936 = scmp.eq.s32.totalorder %s935, 0
  %p937 = pneg %p936
  %939 = shalt.err (%p937)
  %s940 = scalar_lea.sflag [#allocation4], 20
  %941 = vsyncmov %s940
  %s942 = vpop.sfrf %941
  %p943 = scmp.eq.s32.totalorder %s942, 0
  %p944 = pneg %p943
  %946 = shalt.err (%p944)
  %s947 = scalar_lea.sflag [#allocation4], 21
  %948 = vsyncmov %s947
  %s949 = vpop.sfrf %948
  %p950 = scmp.eq.s32.totalorder %s949, 0
  %p951 = pneg %p950
  %953 = shalt.err (%p951)
  %s954 = scalar_lea.sflag [#allocation4], 22
  %955 = vsyncmov %s954
  %s956 = vpop.sfrf %955
  %p957 = scmp.eq.s32.totalorder %s956, 0
  %p958 = pneg %p957
  %960 = shalt.err (%p958)
  %s961 = scalar_lea.sflag [#allocation4], 23
  %962 = vsyncmov %s961
  %s963 = vpop.sfrf %962
  %p964 = scmp.eq.s32.totalorder %s963, 0
  %p965 = pneg %p964
  %967 = shalt.err (%p965)

</llo_original>
